<compile_context>
chip_gen: v7x
topology: tpu7x:2x2x1
jax: 0.10.0
libtpu: 0.0.40
codegen_flags: <defaults>
</compile_context>

<pallas_src>
import functools

import jax
import jax.numpy as jnp
from jax.experimental import pallas as pl
from jax.experimental.pallas import tpu as pltpu


# Geometry fixed by the module: 16x16 input, k=3, stride=2, three conv layers.
_K = 3            # kernel size
_S = 2            # stride
_H1, _W1 = 7, 7   # conv1 output spatial map
_H2, _W2 = 3, 3   # conv2 output spatial map
_K1_PAD = 16      # conv1 im2col K (=9) zero-padded to 16
_OUT_PAD = 128    # fc2 output lanes padded 10 -> 128 (lane-dense stores)


# ----------------------------------------------------------------------------
# Fused Pallas kernel: conv1 -> conv2 -> conv3 -> fc1(tanh) -> fc2
# One grid step processes TB samples.
# ----------------------------------------------------------------------------
def _fused_cnn_kernel(p1_ref, w1_ref, b1_ref, w2_ref, b2_ref, w3_ref, b3_ref,
                      fw1_ref, fb1_ref, fw2_ref, fb2_ref, o_ref, *, tb):
    f32 = jnp.float32
    bf16 = jnp.bfloat16

    # ---- conv1: one (TB*49, 16) x (16, 32) matmul over host-built patches ---
    a1 = jnp.dot(p1_ref[...], w1_ref[...], preferred_element_type=f32)
    a1 = jnp.maximum(a1 + b1_ref[...], 0.0).astype(bf16)       # (TB*49, 32)

    # ---- conv2: big-K im2col -> ONE (9*TB, 288) x (288, 64) matmul ----------
    # a1 rows are ordered p*TB + b (p = conv1 spatial position), so each
    # receptive-field block is a static, sublane-aligned (TB, 32) slice.
    pos_blocks = []
    for oh in range(_H2):
        for ow in range(_W2):
            offs = []
            for i in range(_K):
                for j in range(_K):
                    p = (_S * oh + i) * _W1 + (_S * ow + j)
                    offs.append(a1[p * tb:(p + 1) * tb, :])     # (TB, 32) bf16
            pos_blocks.append(jnp.concatenate(offs, axis=-1))   # (TB, 288)
    lhs2 = jnp.concatenate(pos_blocks, axis=0)                  # (9*TB, 288)
    a2 = jnp.dot(lhs2, w2_ref[...], preferred_element_type=f32)
    a2 = jnp.maximum(a2 + b2_ref[...], 0.0).astype(bf16)        # (9*TB, 64)

    # ---- conv3: full contraction -> ONE (TB, 576) x (576, 128) matmul -------
    lhs3 = jnp.concatenate(
        [a2[s * tb:(s + 1) * tb, :] for s in range(_H2 * _W2)], axis=-1)
    a3 = jnp.dot(lhs3, w3_ref[...], preferred_element_type=f32)
    a3 = jnp.maximum(a3 + b3_ref[...], 0.0).astype(bf16)        # (TB, 128)

    # ---- flatten (already (TB, 128) channel-major) + fc1(tanh) + fc2 --------
    h = jnp.dot(a3, fw1_ref[...], preferred_element_type=f32)
    h = jnp.tanh(h + fb1_ref[...]).astype(bf16)                 # (TB, 64)
    out = jnp.dot(h, fw2_ref[...], preferred_element_type=f32)  # (TB, 128)
    o_ref[...] = (out + fb2_ref[...]).astype(o_ref.dtype)


# ----------------------------------------------------------------------------
# Host-side layout prep (tiny, one-time; fused by XLA under jit)
# ----------------------------------------------------------------------------
def _repack_weights(params):
    """PyTorch-layout weights -> big-K slabs, bf16; fc2 lane-padded to 128."""
    bf16 = jnp.bfloat16
    f32 = jnp.float32
    w1 = params["conv1_w"][:, 0].transpose(1, 2, 0).reshape(_K * _K, 32)
    w1 = jnp.pad(w1, ((0, _K1_PAD - _K * _K), (0, 0))).astype(bf16)       # (16, 32)
    # (OC, IC, KH, KW) -> (KH, KW, IC, OC) -> (K*K*IC, OC)
    w2 = params["conv2_w"].transpose(2, 3, 1, 0).reshape(_K * _K * 32, 64).astype(bf16)    # (288, 64)
    w3 = params["conv3_w"].transpose(2, 3, 1, 0).reshape(_K * _K * 64, 128).astype(bf16)   # (576, 128)
    fw1 = params["fc1_w"].astype(bf16)                                     # (128, 64)
    fw2 = jnp.pad(params["fc2_w"], ((0, 0), (0, _OUT_PAD - 10))).astype(bf16)  # (64, 128)
    b1 = params["conv1_b"].reshape(1, -1).astype(f32)
    b2 = params["conv2_b"].reshape(1, -1).astype(f32)
    b3 = params["conv3_b"].reshape(1, -1).astype(f32)
    fb1 = params["fc1_b"].reshape(1, -1).astype(f32)
    fb2 = jnp.pad(params["fc2_b"].reshape(1, -1),
                  ((0, 0), (0, _OUT_PAD - 10))).astype(f32)                # (1, 128)
    return (w1, b1, w2, b2, w3, b3, fw1, fb1, fw2, fb2)


def _conv1_patches(x, tb):
    """Conv1 im2col, tile-contiguous row order.

    Global row = tile*TB*49 + p*TB + b  (p = conv1 spatial position, b = sample
    within tile), so each grid step's block is a contiguous (TB*49, 16) slab and
    downstream receptive-field slices are static + contiguous.
    K is padded 9 -> 16, batch padded to a multiple of TB (TB is a multiple of
    16 for bf16 sublane packing), cast to bf16.
    """
    B = x.shape[0]
    b_pad = ((B + tb - 1) // tb) * tb
    xs = x[:, 0]                                                 # (B, 16, 16)
    if b_pad != B:
        xs = jnp.pad(xs, ((0, b_pad - B), (0, 0), (0, 0)))
    cols = [xs[:, i:i + _S * _H1:_S, j:j + _S * _W1:_S]
            for i in range(_K) for j in range(_K)]               # 9 x (Bp,7,7)
    p = jnp.stack(cols, axis=-1)                                 # (Bp, 7, 7, 9)
    p = p.reshape(b_pad, _H1 * _W1, _K * _K)                     # (Bp, 49, 9)
    n_tiles = b_pad // tb
    p = p.reshape(n_tiles, tb, _H1 * _W1, _K * _K)
    p = p.transpose(0, 2, 1, 3)                                  # (T, 49, TB, 9)
    p = p.reshape(n_tiles * _H1 * _W1 * tb, _K * _K)
    p = jnp.pad(p, ((0, 0), (0, _K1_PAD - _K * _K)))
    return p.astype(jnp.bfloat16), b_pad


def cnn_forward(params, x, *, max_tile=512):
    """x: (B, 1, 16, 16) f32 -> logits (B, 10) f32 via one batch-tiled kernel."""
    B = x.shape[0]
    tb = min(((B + 15) // 16) * 16, max_tile)        # batch tile (multiple of 16)
    w1, b1, w2, b2, w3, b3, fw1, fb1, fw2, fb2 = _repack_weights(params)
    p1, b_pad = _conv1_patches(x, tb)
    n_tiles = b_pad // tb

    weights = (w1, b1, w2, b2, w3, b3, fw1, fb1, fw2, fb2)
    m1 = tb * _H1 * _W1
    flops_per_tile = 2 * (m1 * _K1_PAD * 32 + 9 * tb * 288 * 64
                          + tb * 576 * 128 + tb * 128 * 64 + tb * 64 * _OUT_PAD)
    bytes_accessed = (p1.size * p1.dtype.itemsize
                      + sum(a.size * a.dtype.itemsize for a in weights)
                      + b_pad * _OUT_PAD * 4)

    const2d = lambda i: (0, 0)
    weight_specs = [pl.BlockSpec(w.shape, const2d) for w in weights]

    out = pl.pallas_call(
        functools.partial(_fused_cnn_kernel, tb=tb),
        out_shape=jax.ShapeDtypeStruct((b_pad, _OUT_PAD), jnp.float32),
        grid=(n_tiles,),
        in_specs=[pl.BlockSpec((m1, _K1_PAD), lambda i: (i, 0))] + weight_specs,
        out_specs=pl.BlockSpec((tb, _OUT_PAD), lambda i: (i, 0)),
        compiler_params=pltpu.CompilerParams(
            dimension_semantics=("parallel",),
            vmem_limit_bytes=32 * 1024 * 1024),
        cost_estimate=pl.CostEstimate(
            flops=n_tiles * flops_per_tile,
            transcendentals=b_pad * 64,
            bytes_accessed=bytes_accessed),
    )(p1, *weights)
    return out[:B, :10]


# ----------------------------------------------------------------------------
# Parameter init (deterministic, PyTorch-like uniform bounds)
# ----------------------------------------------------------------------------
def _uniform(key, shape, bound):
    return jax.random.uniform(key, shape, dtype=jnp.float32,
                              minval=-bound, maxval=bound)


def init_params(key):
    ks = jax.random.split(key, 10)
    params = {}

    def conv_init(kw_, kb_, oc, ic, k):
        bound = 1.0 / ((ic * k * k) ** 0.5)
        return (_uniform(kw_, (oc, ic, k, k), bound), _uniform(kb_, (oc,), bound))

    def fc_init(kw_, kb_, out_f, in_f):
        bound = 1.0 / (in_f ** 0.5)
        return (_uniform(kw_, (in_f, out_f), bound), _uniform(kb_, (out_f,), bound))

    params["conv1_w"], params["conv1_b"] = conv_init(ks[0], ks[1], 32, 1, 3)
    params["conv2_w"], params["conv2_b"] = conv_init(ks[2], ks[3], 64, 32, 3)
    params["conv3_w"], params["conv3_b"] = conv_init(ks[4], ks[5], 128, 64, 3)
    params["fc1_w"], params["fc1_b"] = fc_init(ks[6], ks[7], 64, 128)
    params["fc2_w"], params["fc2_b"] = fc_init(ks[8], ks[9], 10, 64)
    return params


# ----------------------------------------------------------------------------
# Plain-JAX f32 reference (mirrors CNNModel.forward) for a sanity check
# ----------------------------------------------------------------------------
def cnn_reference(params, x):
    def conv(z, w, b):
        y = jax.lax.conv_general_dilated(
            z, w, window_strides=(_S, _S), padding="VALID",
            dimension_numbers=("NCHW", "OIHW", "NCHW"))
        return jax.nn.relu(y + b.reshape(1, -1, 1, 1))

    x = conv(x, params["conv1_w"], params["conv1_b"])
    x = conv(x, params["conv2_w"], params["conv2_b"])
    x = conv(x, params["conv3_w"], params["conv3_b"])
    x = x.reshape(x.shape[0], -1)
    x = jnp.tanh(x @ params["fc1_w"] + params["fc1_b"])
    return x @ params["fc2_w"] + params["fc2_b"]


if __name__ == "__main__":
    key = jax.random.PRNGKey(0)
    pkey, xkey = jax.random.split(key)
    params = init_params(pkey)

    # 16x16 input: three stride-2 k=3 convs reduce to 1x1, matching
    # fc1 = Linear(128 * 1 * 1, 64).
    x = jax.random.normal(xkey, (2, 1, 16, 16), dtype=jnp.float32)

    fwd = jax.jit(cnn_forward)
    out = jax.block_until_ready(fwd(params, x))
    assert out.shape == (2, 10), out.shape

    ref = jax.block_until_ready(cnn_reference(params, x))
    max_err = float(jnp.max(jnp.abs(out - ref)))
    assert max_err < 1e-1, f"kernel/reference mismatch: max_err={max_err}"
    print("KERNEL_OK")
</pallas_src>

<mosaic_0001>
module attributes {stable_mosaic.version = 11 : i64} {
  func.func @_fused_cnn_kernel(%arg0: i32, %arg1: memref<784x16xbf16, #tpu.memory_space<vmem>>, %arg2: memref<16x32xbf16, #tpu.memory_space<vmem>>, %arg3: memref<1x32xf32, #tpu.memory_space<vmem>>, %arg4: memref<288x64xbf16, #tpu.memory_space<vmem>>, %arg5: memref<1x64xf32, #tpu.memory_space<vmem>>, %arg6: memref<576x128xbf16, #tpu.memory_space<vmem>>, %arg7: memref<1x128xf32, #tpu.memory_space<vmem>>, %arg8: memref<128x64xbf16, #tpu.memory_space<vmem>>, %arg9: memref<1x64xf32, #tpu.memory_space<vmem>>, %arg10: memref<64x128xbf16, #tpu.memory_space<vmem>>, %arg11: memref<1x128xf32, #tpu.memory_space<vmem>>, %arg12: memref<16x128xf32, #tpu.memory_space<vmem>>) attributes {dimension_semantics = [#tpu.dimension_semantics<parallel>], iteration_bounds = array<i64: 1>, scalar_prefetch = 0 : i64, scratch_operands = 0 : i64, tpu.core_type = #tpu.core_type<tc>, window_params = [{transform_indices = @transform_0, window_bounds = array<i64: 784, 16>}, {pipeline_mode = #tpu.pipeline_mode<synchronous>, transform_indices = @transform_1, window_bounds = array<i64: 16, 32>}, {pipeline_mode = #tpu.pipeline_mode<synchronous>, transform_indices = @transform_2, window_bounds = array<i64: 1, 32>}, {pipeline_mode = #tpu.pipeline_mode<synchronous>, transform_indices = @transform_3, window_bounds = array<i64: 288, 64>}, {pipeline_mode = #tpu.pipeline_mode<synchronous>, transform_indices = @transform_4, window_bounds = array<i64: 1, 64>}, {pipeline_mode = #tpu.pipeline_mode<synchronous>, transform_indices = @transform_5, window_bounds = array<i64: 576, 128>}, {pipeline_mode = #tpu.pipeline_mode<synchronous>, transform_indices = @transform_6, window_bounds = array<i64: 1, 128>}, {pipeline_mode = #tpu.pipeline_mode<synchronous>, transform_indices = @transform_7, window_bounds = array<i64: 128, 64>}, {pipeline_mode = #tpu.pipeline_mode<synchronous>, transform_indices = @transform_8, window_bounds = array<i64: 1, 64>}, {pipeline_mode = #tpu.pipeline_mode<synchronous>, transform_indices = @transform_9, window_bounds = array<i64: 64, 128>}, {pipeline_mode = #tpu.pipeline_mode<synchronous>, transform_indices = @transform_10, window_bounds = array<i64: 1, 128>}, {transform_indices = @transform_11, window_bounds = array<i64: 16, 128>}]} {
    %c0 = arith.constant 0 : index
    %c0_0 = arith.constant 0 : index
    %0 = vector.load %arg1[%c0, %c0_0] : memref<784x16xbf16, #tpu.memory_space<vmem>>, vector<784x16xbf16>
    %c0_1 = arith.constant 0 : index
    %c0_2 = arith.constant 0 : index
    %1 = vector.load %arg2[%c0_1, %c0_2] : memref<16x32xbf16, #tpu.memory_space<vmem>>, vector<16x32xbf16>
    %cst = arith.constant dense<0.000000e+00> : vector<784x32xf32>
    %2 = tpu.matmul %0, %1, %cst {dimension_numbers = #tpu.dot_dimension_numbers<[1], [0], [0], [1], [0, 0, 1, 1], [], []>} : vector<784x16xbf16>, vector<16x32xbf16>, vector<784x32xf32> -> vector<784x32xf32>
    %c0_3 = arith.constant 0 : index
    %c0_4 = arith.constant 0 : index
    %3 = vector.load %arg3[%c0_3, %c0_4] : memref<1x32xf32, #tpu.memory_space<vmem>>, vector<1x32xf32>
    %4 = vector.broadcast %3 : vector<1x32xf32> to vector<784x32xf32>
    %5 = arith.addf %2, %4 : vector<784x32xf32>
    %cst_5 = arith.constant 0.000000e+00 : f32
    %6 = vector.broadcast %cst_5 : f32 to vector<784x32xf32>
    %7 = arith.maximumf %5, %6 : vector<784x32xf32>
    %8 = arith.truncf %7 : vector<784x32xf32> to vector<784x32xbf16>
    %9 = vector.extract_strided_slice %8 {offsets = [0, 0], sizes = [16, 32], strides = [1, 1]} : vector<784x32xbf16> to vector<16x32xbf16>
    %10 = vector.extract_strided_slice %8 {offsets = [16, 0], sizes = [16, 32], strides = [1, 1]} : vector<784x32xbf16> to vector<16x32xbf16>
    %11 = vector.extract_strided_slice %8 {offsets = [32, 0], sizes = [16, 32], strides = [1, 1]} : vector<784x32xbf16> to vector<16x32xbf16>
    %12 = vector.extract_strided_slice %8 {offsets = [112, 0], sizes = [16, 32], strides = [1, 1]} : vector<784x32xbf16> to vector<16x32xbf16>
    %13 = vector.extract_strided_slice %8 {offsets = [128, 0], sizes = [16, 32], strides = [1, 1]} : vector<784x32xbf16> to vector<16x32xbf16>
    %14 = vector.extract_strided_slice %8 {offsets = [144, 0], sizes = [16, 32], strides = [1, 1]} : vector<784x32xbf16> to vector<16x32xbf16>
    %15 = vector.extract_strided_slice %8 {offsets = [224, 0], sizes = [16, 32], strides = [1, 1]} : vector<784x32xbf16> to vector<16x32xbf16>
    %16 = vector.extract_strided_slice %8 {offsets = [240, 0], sizes = [16, 32], strides = [1, 1]} : vector<784x32xbf16> to vector<16x32xbf16>
    %17 = vector.extract_strided_slice %8 {offsets = [256, 0], sizes = [16, 32], strides = [1, 1]} : vector<784x32xbf16> to vector<16x32xbf16>
    %18 = tpu.concatenate %9, %10, %11, %12, %13, %14, %15, %16, %17 in 1 : vector<16x32xbf16>, vector<16x32xbf16>, vector<16x32xbf16>, vector<16x32xbf16>, vector<16x32xbf16>, vector<16x32xbf16>, vector<16x32xbf16>, vector<16x32xbf16>, vector<16x32xbf16> -> vector<16x288xbf16>
    %19 = vector.extract_strided_slice %8 {offsets = [32, 0], sizes = [16, 32], strides = [1, 1]} : vector<784x32xbf16> to vector<16x32xbf16>
    %20 = vector.extract_strided_slice %8 {offsets = [48, 0], sizes = [16, 32], strides = [1, 1]} : vector<784x32xbf16> to vector<16x32xbf16>
    %21 = vector.extract_strided_slice %8 {offsets = [64, 0], sizes = [16, 32], strides = [1, 1]} : vector<784x32xbf16> to vector<16x32xbf16>
    %22 = vector.extract_strided_slice %8 {offsets = [144, 0], sizes = [16, 32], strides = [1, 1]} : vector<784x32xbf16> to vector<16x32xbf16>
    %23 = vector.extract_strided_slice %8 {offsets = [160, 0], sizes = [16, 32], strides = [1, 1]} : vector<784x32xbf16> to vector<16x32xbf16>
    %24 = vector.extract_strided_slice %8 {offsets = [176, 0], sizes = [16, 32], strides = [1, 1]} : vector<784x32xbf16> to vector<16x32xbf16>
    %25 = vector.extract_strided_slice %8 {offsets = [256, 0], sizes = [16, 32], strides = [1, 1]} : vector<784x32xbf16> to vector<16x32xbf16>
    %26 = vector.extract_strided_slice %8 {offsets = [272, 0], sizes = [16, 32], strides = [1, 1]} : vector<784x32xbf16> to vector<16x32xbf16>
    %27 = vector.extract_strided_slice %8 {offsets = [288, 0], sizes = [16, 32], strides = [1, 1]} : vector<784x32xbf16> to vector<16x32xbf16>
    %28 = tpu.concatenate %19, %20, %21, %22, %23, %24, %25, %26, %27 in 1 : vector<16x32xbf16>, vector<16x32xbf16>, vector<16x32xbf16>, vector<16x32xbf16>, vector<16x32xbf16>, vector<16x32xbf16>, vector<16x32xbf16>, vector<16x32xbf16>, vector<16x32xbf16> -> vector<16x288xbf16>
    %29 = vector.extract_strided_slice %8 {offsets = [64, 0], sizes = [16, 32], strides = [1, 1]} : vector<784x32xbf16> to vector<16x32xbf16>
    %30 = vector.extract_strided_slice %8 {offsets = [80, 0], sizes = [16, 32], strides = [1, 1]} : vector<784x32xbf16> to vector<16x32xbf16>
    %31 = vector.extract_strided_slice %8 {offsets = [96, 0], sizes = [16, 32], strides = [1, 1]} : vector<784x32xbf16> to vector<16x32xbf16>
    %32 = vector.extract_strided_slice %8 {offsets = [176, 0], sizes = [16, 32], strides = [1, 1]} : vector<784x32xbf16> to vector<16x32xbf16>
    %33 = vector.extract_strided_slice %8 {offsets = [192, 0], sizes = [16, 32], strides = [1, 1]} : vector<784x32xbf16> to vector<16x32xbf16>
    %34 = vector.extract_strided_slice %8 {offsets = [208, 0], sizes = [16, 32], strides = [1, 1]} : vector<784x32xbf16> to vector<16x32xbf16>
    %35 = vector.extract_strided_slice %8 {offsets = [288, 0], sizes = [16, 32], strides = [1, 1]} : vector<784x32xbf16> to vector<16x32xbf16>
    %36 = vector.extract_strided_slice %8 {offsets = [304, 0], sizes = [16, 32], strides = [1, 1]} : vector<784x32xbf16> to vector<16x32xbf16>
    %37 = vector.extract_strided_slice %8 {offsets = [320, 0], sizes = [16, 32], strides = [1, 1]} : vector<784x32xbf16> to vector<16x32xbf16>
    %38 = tpu.concatenate %29, %30, %31, %32, %33, %34, %35, %36, %37 in 1 : vector<16x32xbf16>, vector<16x32xbf16>, vector<16x32xbf16>, vector<16x32xbf16>, vector<16x32xbf16>, vector<16x32xbf16>, vector<16x32xbf16>, vector<16x32xbf16>, vector<16x32xbf16> -> vector<16x288xbf16>
    %39 = vector.extract_strided_slice %8 {offsets = [224, 0], sizes = [16, 32], strides = [1, 1]} : vector<784x32xbf16> to vector<16x32xbf16>
    %40 = vector.extract_strided_slice %8 {offsets = [240, 0], sizes = [16, 32], strides = [1, 1]} : vector<784x32xbf16> to vector<16x32xbf16>
    %41 = vector.extract_strided_slice %8 {offsets = [256, 0], sizes = [16, 32], strides = [1, 1]} : vector<784x32xbf16> to vector<16x32xbf16>
    %42 = vector.extract_strided_slice %8 {offsets = [336, 0], sizes = [16, 32], strides = [1, 1]} : vector<784x32xbf16> to vector<16x32xbf16>
    %43 = vector.extract_strided_slice %8 {offsets = [352, 0], sizes = [16, 32], strides = [1, 1]} : vector<784x32xbf16> to vector<16x32xbf16>
    %44 = vector.extract_strided_slice %8 {offsets = [368, 0], sizes = [16, 32], strides = [1, 1]} : vector<784x32xbf16> to vector<16x32xbf16>
    %45 = vector.extract_strided_slice %8 {offsets = [448, 0], sizes = [16, 32], strides = [1, 1]} : vector<784x32xbf16> to vector<16x32xbf16>
    %46 = vector.extract_strided_slice %8 {offsets = [464, 0], sizes = [16, 32], strides = [1, 1]} : vector<784x32xbf16> to vector<16x32xbf16>
    %47 = vector.extract_strided_slice %8 {offsets = [480, 0], sizes = [16, 32], strides = [1, 1]} : vector<784x32xbf16> to vector<16x32xbf16>
    %48 = tpu.concatenate %39, %40, %41, %42, %43, %44, %45, %46, %47 in 1 : vector<16x32xbf16>, vector<16x32xbf16>, vector<16x32xbf16>, vector<16x32xbf16>, vector<16x32xbf16>, vector<16x32xbf16>, vector<16x32xbf16>, vector<16x32xbf16>, vector<16x32xbf16> -> vector<16x288xbf16>
    %49 = vector.extract_strided_slice %8 {offsets = [256, 0], sizes = [16, 32], strides = [1, 1]} : vector<784x32xbf16> to vector<16x32xbf16>
    %50 = vector.extract_strided_slice %8 {offsets = [272, 0], sizes = [16, 32], strides = [1, 1]} : vector<784x32xbf16> to vector<16x32xbf16>
    %51 = vector.extract_strided_slice %8 {offsets = [288, 0], sizes = [16, 32], strides = [1, 1]} : vector<784x32xbf16> to vector<16x32xbf16>
    %52 = vector.extract_strided_slice %8 {offsets = [368, 0], sizes = [16, 32], strides = [1, 1]} : vector<784x32xbf16> to vector<16x32xbf16>
    %53 = vector.extract_strided_slice %8 {offsets = [384, 0], sizes = [16, 32], strides = [1, 1]} : vector<784x32xbf16> to vector<16x32xbf16>
    %54 = vector.extract_strided_slice %8 {offsets = [400, 0], sizes = [16, 32], strides = [1, 1]} : vector<784x32xbf16> to vector<16x32xbf16>
    %55 = vector.extract_strided_slice %8 {offsets = [480, 0], sizes = [16, 32], strides = [1, 1]} : vector<784x32xbf16> to vector<16x32xbf16>
    %56 = vector.extract_strided_slice %8 {offsets = [496, 0], sizes = [16, 32], strides = [1, 1]} : vector<784x32xbf16> to vector<16x32xbf16>
    %57 = vector.extract_strided_slice %8 {offsets = [512, 0], sizes = [16, 32], strides = [1, 1]} : vector<784x32xbf16> to vector<16x32xbf16>
    %58 = tpu.concatenate %49, %50, %51, %52, %53, %54, %55, %56, %57 in 1 : vector<16x32xbf16>, vector<16x32xbf16>, vector<16x32xbf16>, vector<16x32xbf16>, vector<16x32xbf16>, vector<16x32xbf16>, vector<16x32xbf16>, vector<16x32xbf16>, vector<16x32xbf16> -> vector<16x288xbf16>
    %59 = vector.extract_strided_slice %8 {offsets = [288, 0], sizes = [16, 32], strides = [1, 1]} : vector<784x32xbf16> to vector<16x32xbf16>
    %60 = vector.extract_strided_slice %8 {offsets = [304, 0], sizes = [16, 32], strides = [1, 1]} : vector<784x32xbf16> to vector<16x32xbf16>
    %61 = vector.extract_strided_slice %8 {offsets = [320, 0], sizes = [16, 32], strides = [1, 1]} : vector<784x32xbf16> to vector<16x32xbf16>
    %62 = vector.extract_strided_slice %8 {offsets = [400, 0], sizes = [16, 32], strides = [1, 1]} : vector<784x32xbf16> to vector<16x32xbf16>
    %63 = vector.extract_strided_slice %8 {offsets = [416, 0], sizes = [16, 32], strides = [1, 1]} : vector<784x32xbf16> to vector<16x32xbf16>
    %64 = vector.extract_strided_slice %8 {offsets = [432, 0], sizes = [16, 32], strides = [1, 1]} : vector<784x32xbf16> to vector<16x32xbf16>
    %65 = vector.extract_strided_slice %8 {offsets = [512, 0], sizes = [16, 32], strides = [1, 1]} : vector<784x32xbf16> to vector<16x32xbf16>
    %66 = vector.extract_strided_slice %8 {offsets = [528, 0], sizes = [16, 32], strides = [1, 1]} : vector<784x32xbf16> to vector<16x32xbf16>
    %67 = vector.extract_strided_slice %8 {offsets = [544, 0], sizes = [16, 32], strides = [1, 1]} : vector<784x32xbf16> to vector<16x32xbf16>
    %68 = tpu.concatenate %59, %60, %61, %62, %63, %64, %65, %66, %67 in 1 : vector<16x32xbf16>, vector<16x32xbf16>, vector<16x32xbf16>, vector<16x32xbf16>, vector<16x32xbf16>, vector<16x32xbf16>, vector<16x32xbf16>, vector<16x32xbf16>, vector<16x32xbf16> -> vector<16x288xbf16>
    %69 = vector.extract_strided_slice %8 {offsets = [448, 0], sizes = [16, 32], strides = [1, 1]} : vector<784x32xbf16> to vector<16x32xbf16>
    %70 = vector.extract_strided_slice %8 {offsets = [464, 0], sizes = [16, 32], strides = [1, 1]} : vector<784x32xbf16> to vector<16x32xbf16>
    %71 = vector.extract_strided_slice %8 {offsets = [480, 0], sizes = [16, 32], strides = [1, 1]} : vector<784x32xbf16> to vector<16x32xbf16>
    %72 = vector.extract_strided_slice %8 {offsets = [560, 0], sizes = [16, 32], strides = [1, 1]} : vector<784x32xbf16> to vector<16x32xbf16>
    %73 = vector.extract_strided_slice %8 {offsets = [576, 0], sizes = [16, 32], strides = [1, 1]} : vector<784x32xbf16> to vector<16x32xbf16>
    %74 = vector.extract_strided_slice %8 {offsets = [592, 0], sizes = [16, 32], strides = [1, 1]} : vector<784x32xbf16> to vector<16x32xbf16>
    %75 = vector.extract_strided_slice %8 {offsets = [672, 0], sizes = [16, 32], strides = [1, 1]} : vector<784x32xbf16> to vector<16x32xbf16>
    %76 = vector.extract_strided_slice %8 {offsets = [688, 0], sizes = [16, 32], strides = [1, 1]} : vector<784x32xbf16> to vector<16x32xbf16>
    %77 = vector.extract_strided_slice %8 {offsets = [704, 0], sizes = [16, 32], strides = [1, 1]} : vector<784x32xbf16> to vector<16x32xbf16>
    %78 = tpu.concatenate %69, %70, %71, %72, %73, %74, %75, %76, %77 in 1 : vector<16x32xbf16>, vector<16x32xbf16>, vector<16x32xbf16>, vector<16x32xbf16>, vector<16x32xbf16>, vector<16x32xbf16>, vector<16x32xbf16>, vector<16x32xbf16>, vector<16x32xbf16> -> vector<16x288xbf16>
    %79 = vector.extract_strided_slice %8 {offsets = [480, 0], sizes = [16, 32], strides = [1, 1]} : vector<784x32xbf16> to vector<16x32xbf16>
    %80 = vector.extract_strided_slice %8 {offsets = [496, 0], sizes = [16, 32], strides = [1, 1]} : vector<784x32xbf16> to vector<16x32xbf16>
    %81 = vector.extract_strided_slice %8 {offsets = [512, 0], sizes = [16, 32], strides = [1, 1]} : vector<784x32xbf16> to vector<16x32xbf16>
    %82 = vector.extract_strided_slice %8 {offsets = [592, 0], sizes = [16, 32], strides = [1, 1]} : vector<784x32xbf16> to vector<16x32xbf16>
    %83 = vector.extract_strided_slice %8 {offsets = [608, 0], sizes = [16, 32], strides = [1, 1]} : vector<784x32xbf16> to vector<16x32xbf16>
    %84 = vector.extract_strided_slice %8 {offsets = [624, 0], sizes = [16, 32], strides = [1, 1]} : vector<784x32xbf16> to vector<16x32xbf16>
    %85 = vector.extract_strided_slice %8 {offsets = [704, 0], sizes = [16, 32], strides = [1, 1]} : vector<784x32xbf16> to vector<16x32xbf16>
    %86 = vector.extract_strided_slice %8 {offsets = [720, 0], sizes = [16, 32], strides = [1, 1]} : vector<784x32xbf16> to vector<16x32xbf16>
    %87 = vector.extract_strided_slice %8 {offsets = [736, 0], sizes = [16, 32], strides = [1, 1]} : vector<784x32xbf16> to vector<16x32xbf16>
    %88 = tpu.concatenate %79, %80, %81, %82, %83, %84, %85, %86, %87 in 1 : vector<16x32xbf16>, vector<16x32xbf16>, vector<16x32xbf16>, vector<16x32xbf16>, vector<16x32xbf16>, vector<16x32xbf16>, vector<16x32xbf16>, vector<16x32xbf16>, vector<16x32xbf16> -> vector<16x288xbf16>
    %89 = vector.extract_strided_slice %8 {offsets = [512, 0], sizes = [16, 32], strides = [1, 1]} : vector<784x32xbf16> to vector<16x32xbf16>
    %90 = vector.extract_strided_slice %8 {offsets = [528, 0], sizes = [16, 32], strides = [1, 1]} : vector<784x32xbf16> to vector<16x32xbf16>
    %91 = vector.extract_strided_slice %8 {offsets = [544, 0], sizes = [16, 32], strides = [1, 1]} : vector<784x32xbf16> to vector<16x32xbf16>
    %92 = vector.extract_strided_slice %8 {offsets = [624, 0], sizes = [16, 32], strides = [1, 1]} : vector<784x32xbf16> to vector<16x32xbf16>
    %93 = vector.extract_strided_slice %8 {offsets = [640, 0], sizes = [16, 32], strides = [1, 1]} : vector<784x32xbf16> to vector<16x32xbf16>
    %94 = vector.extract_strided_slice %8 {offsets = [656, 0], sizes = [16, 32], strides = [1, 1]} : vector<784x32xbf16> to vector<16x32xbf16>
    %95 = vector.extract_strided_slice %8 {offsets = [736, 0], sizes = [16, 32], strides = [1, 1]} : vector<784x32xbf16> to vector<16x32xbf16>
    %96 = vector.extract_strided_slice %8 {offsets = [752, 0], sizes = [16, 32], strides = [1, 1]} : vector<784x32xbf16> to vector<16x32xbf16>
    %97 = vector.extract_strided_slice %8 {offsets = [768, 0], sizes = [16, 32], strides = [1, 1]} : vector<784x32xbf16> to vector<16x32xbf16>
    %98 = tpu.concatenate %89, %90, %91, %92, %93, %94, %95, %96, %97 in 1 : vector<16x32xbf16>, vector<16x32xbf16>, vector<16x32xbf16>, vector<16x32xbf16>, vector<16x32xbf16>, vector<16x32xbf16>, vector<16x32xbf16>, vector<16x32xbf16>, vector<16x32xbf16> -> vector<16x288xbf16>
    %99 = tpu.concatenate %18, %28, %38, %48, %58, %68, %78, %88, %98 in 0 : vector<16x288xbf16>, vector<16x288xbf16>, vector<16x288xbf16>, vector<16x288xbf16>, vector<16x288xbf16>, vector<16x288xbf16>, vector<16x288xbf16>, vector<16x288xbf16>, vector<16x288xbf16> -> vector<144x288xbf16>
    %c0_6 = arith.constant 0 : index
    %c0_7 = arith.constant 0 : index
    %100 = vector.load %arg4[%c0_6, %c0_7] : memref<288x64xbf16, #tpu.memory_space<vmem>>, vector<288x64xbf16>
    %cst_8 = arith.constant dense<0.000000e+00> : vector<144x64xf32>
    %101 = tpu.matmul %99, %100, %cst_8 {dimension_numbers = #tpu.dot_dimension_numbers<[1], [0], [0], [1], [0, 0, 1, 1], [], []>} : vector<144x288xbf16>, vector<288x64xbf16>, vector<144x64xf32> -> vector<144x64xf32>
    %c0_9 = arith.constant 0 : index
    %c0_10 = arith.constant 0 : index
    %102 = vector.load %arg5[%c0_9, %c0_10] : memref<1x64xf32, #tpu.memory_space<vmem>>, vector<1x64xf32>
    %103 = vector.broadcast %102 : vector<1x64xf32> to vector<144x64xf32>
    %104 = arith.addf %101, %103 : vector<144x64xf32>
    %cst_11 = arith.constant 0.000000e+00 : f32
    %105 = vector.broadcast %cst_11 : f32 to vector<144x64xf32>
    %106 = arith.maximumf %104, %105 : vector<144x64xf32>
    %107 = arith.truncf %106 : vector<144x64xf32> to vector<144x64xbf16>
    %108 = vector.extract_strided_slice %107 {offsets = [0, 0], sizes = [16, 64], strides = [1, 1]} : vector<144x64xbf16> to vector<16x64xbf16>
    %109 = vector.extract_strided_slice %107 {offsets = [16, 0], sizes = [16, 64], strides = [1, 1]} : vector<144x64xbf16> to vector<16x64xbf16>
    %110 = vector.extract_strided_slice %107 {offsets = [32, 0], sizes = [16, 64], strides = [1, 1]} : vector<144x64xbf16> to vector<16x64xbf16>
    %111 = vector.extract_strided_slice %107 {offsets = [48, 0], sizes = [16, 64], strides = [1, 1]} : vector<144x64xbf16> to vector<16x64xbf16>
    %112 = vector.extract_strided_slice %107 {offsets = [64, 0], sizes = [16, 64], strides = [1, 1]} : vector<144x64xbf16> to vector<16x64xbf16>
    %113 = vector.extract_strided_slice %107 {offsets = [80, 0], sizes = [16, 64], strides = [1, 1]} : vector<144x64xbf16> to vector<16x64xbf16>
    %114 = vector.extract_strided_slice %107 {offsets = [96, 0], sizes = [16, 64], strides = [1, 1]} : vector<144x64xbf16> to vector<16x64xbf16>
    %115 = vector.extract_strided_slice %107 {offsets = [112, 0], sizes = [16, 64], strides = [1, 1]} : vector<144x64xbf16> to vector<16x64xbf16>
    %116 = vector.extract_strided_slice %107 {offsets = [128, 0], sizes = [16, 64], strides = [1, 1]} : vector<144x64xbf16> to vector<16x64xbf16>
    %117 = tpu.concatenate %108, %109, %110, %111, %112, %113, %114, %115, %116 in 1 : vector<16x64xbf16>, vector<16x64xbf16>, vector<16x64xbf16>, vector<16x64xbf16>, vector<16x64xbf16>, vector<16x64xbf16>, vector<16x64xbf16>, vector<16x64xbf16>, vector<16x64xbf16> -> vector<16x576xbf16>
    %c0_12 = arith.constant 0 : index
    %c0_13 = arith.constant 0 : index
    %118 = vector.load %arg6[%c0_12, %c0_13] : memref<576x128xbf16, #tpu.memory_space<vmem>>, vector<576x128xbf16>
    %cst_14 = arith.constant dense<0.000000e+00> : vector<16x128xf32>
    %119 = tpu.matmul %117, %118, %cst_14 {dimension_numbers = #tpu.dot_dimension_numbers<[1], [0], [0], [1], [0, 0, 1, 1], [], []>} : vector<16x576xbf16>, vector<576x128xbf16>, vector<16x128xf32> -> vector<16x128xf32>
    %c0_15 = arith.constant 0 : index
    %c0_16 = arith.constant 0 : index
    %120 = vector.load %arg7[%c0_15, %c0_16] : memref<1x128xf32, #tpu.memory_space<vmem>>, vector<1x128xf32>
    %121 = vector.broadcast %120 : vector<1x128xf32> to vector<16x128xf32>
    %122 = arith.addf %119, %121 : vector<16x128xf32>
    %cst_17 = arith.constant 0.000000e+00 : f32
    %123 = vector.broadcast %cst_17 : f32 to vector<16x128xf32>
    %124 = arith.maximumf %122, %123 : vector<16x128xf32>
    %125 = arith.truncf %124 : vector<16x128xf32> to vector<16x128xbf16>
    %c0_18 = arith.constant 0 : index
    %c0_19 = arith.constant 0 : index
    %126 = vector.load %arg8[%c0_18, %c0_19] : memref<128x64xbf16, #tpu.memory_space<vmem>>, vector<128x64xbf16>
    %cst_20 = arith.constant dense<0.000000e+00> : vector<16x64xf32>
    %127 = tpu.matmul %125, %126, %cst_20 {dimension_numbers = #tpu.dot_dimension_numbers<[1], [0], [0], [1], [0, 0, 1, 1], [], []>} : vector<16x128xbf16>, vector<128x64xbf16>, vector<16x64xf32> -> vector<16x64xf32>
    %c0_21 = arith.constant 0 : index
    %c0_22 = arith.constant 0 : index
    %128 = vector.load %arg9[%c0_21, %c0_22] : memref<1x64xf32, #tpu.memory_space<vmem>>, vector<1x64xf32>
    %129 = vector.broadcast %128 : vector<1x64xf32> to vector<16x64xf32>
    %130 = arith.addf %127, %129 : vector<16x64xf32>
    %131 = math.tanh %130 : vector<16x64xf32>
    %132 = arith.truncf %131 : vector<16x64xf32> to vector<16x64xbf16>
    %c0_23 = arith.constant 0 : index
    %c0_24 = arith.constant 0 : index
    %133 = vector.load %arg10[%c0_23, %c0_24] : memref<64x128xbf16, #tpu.memory_space<vmem>>, vector<64x128xbf16>
    %cst_25 = arith.constant dense<0.000000e+00> : vector<16x128xf32>
    %134 = tpu.matmul %132, %133, %cst_25 {dimension_numbers = #tpu.dot_dimension_numbers<[1], [0], [0], [1], [0, 0, 1, 1], [], []>} : vector<16x64xbf16>, vector<64x128xbf16>, vector<16x128xf32> -> vector<16x128xf32>
    %c0_26 = arith.constant 0 : index
    %c0_27 = arith.constant 0 : index
    %135 = vector.load %arg11[%c0_26, %c0_27] : memref<1x128xf32, #tpu.memory_space<vmem>>, vector<1x128xf32>
    %136 = vector.broadcast %135 : vector<1x128xf32> to vector<16x128xf32>
    %137 = arith.addf %134, %136 : vector<16x128xf32>
    %c0_28 = arith.constant 0 : index
    %c0_29 = arith.constant 0 : index
    %138 = vector.load %arg12[%c0_28, %c0_29] : memref<16x128xf32, #tpu.memory_space<vmem>>, vector<16x128xf32>
    tpu.vector_store %arg12[%c0_28, %c0_29], %137 {strides = array<i32>} : memref<16x128xf32, #tpu.memory_space<vmem>>, vector<16x128xf32>,
    return
  }
  func.func @transform_0(%arg0: i32) -> (i32, i32) {
    %c0_i32 = arith.constant 0 : i32
    %c0_i32_0 = arith.constant 0 : i32
    return %arg0, %c0_i32 : i32, i32
  }
  func.func @transform_1(%arg0: i32) -> (i32, i32) {
    %c0_i32 = arith.constant 0 : i32
    %c0_i32_0 = arith.constant 0 : i32
    %c0_i32_1 = arith.constant 0 : i32
    return %c0_i32, %c0_i32_0 : i32, i32
  }
  func.func @transform_2(%arg0: i32) -> (i32, i32) {
    %c0_i32 = arith.constant 0 : i32
    %c0_i32_0 = arith.constant 0 : i32
    %c0_i32_1 = arith.constant 0 : i32
    return %c0_i32, %c0_i32_0 : i32, i32
  }
  func.func @transform_3(%arg0: i32) -> (i32, i32) {
    %c0_i32 = arith.constant 0 : i32
    %c0_i32_0 = arith.constant 0 : i32
    %c0_i32_1 = arith.constant 0 : i32
    return %c0_i32, %c0_i32_0 : i32, i32
  }
  func.func @transform_4(%arg0: i32) -> (i32, i32) {
    %c0_i32 = arith.constant 0 : i32
    %c0_i32_0 = arith.constant 0 : i32
    %c0_i32_1 = arith.constant 0 : i32
    return %c0_i32, %c0_i32_0 : i32, i32
  }
  func.func @transform_5(%arg0: i32) -> (i32, i32) {
    %c0_i32 = arith.constant 0 : i32
    %c0_i32_0 = arith.constant 0 : i32
    %c0_i32_1 = arith.constant 0 : i32
    return %c0_i32, %c0_i32_0 : i32, i32
  }
  func.func @transform_6(%arg0: i32) -> (i32, i32) {
    %c0_i32 = arith.constant 0 : i32
    %c0_i32_0 = arith.constant 0 : i32
    %c0_i32_1 = arith.constant 0 : i32
    return %c0_i32, %c0_i32_0 : i32, i32
  }
  func.func @transform_7(%arg0: i32) -> (i32, i32) {
    %c0_i32 = arith.constant 0 : i32
    %c0_i32_0 = arith.constant 0 : i32
    %c0_i32_1 = arith.constant 0 : i32
    return %c0_i32, %c0_i32_0 : i32, i32
  }
  func.func @transform_8(%arg0: i32) -> (i32, i32) {
    %c0_i32 = arith.constant 0 : i32
    %c0_i32_0 = arith.constant 0 : i32
    %c0_i32_1 = arith.constant 0 : i32
    return %c0_i32, %c0_i32_0 : i32, i32
  }
  func.func @transform_9(%arg0: i32) -> (i32, i32) {
    %c0_i32 = arith.constant 0 : i32
    %c0_i32_0 = arith.constant 0 : i32
    %c0_i32_1 = arith.constant 0 : i32
    return %c0_i32, %c0_i32_0 : i32, i32
  }
  func.func @transform_10(%arg0: i32) -> (i32, i32) {
    %c0_i32 = arith.constant 0 : i32
    %c0_i32_0 = arith.constant 0 : i32
    %c0_i32_1 = arith.constant 0 : i32
    return %c0_i32, %c0_i32_0 : i32, i32
  }
  func.func @transform_11(%arg0: i32) -> (i32, i32) {
    %c0_i32 = arith.constant 0 : i32
    %c0_i32_0 = arith.constant 0 : i32
    return %arg0, %c0_i32 : i32, i32
  }
}

</mosaic_0001>

<llo_original>
// kernel: cnn_forward.1
$region0: #{cnn_forward.1}
  #allocation0 [shape = 'u32[]', space=smem, size = 0x4, offset = 0x4, fixed_abs, tag = 'smem constant byte address 0x4 - core index']
  #allocation1 [shape = 'u32[144,128]{1,0:T(1,128)}', space=vmem, size = 0x12000, scoped, tag = 'internal scratch']
  %s0 = inlined_call_operand.vmem [shape: bf16[784,16], index: 0, kind: input, shape index: {}]
  %s1 = inlined_call_operand.vmem [shape: bf16[16,32], index: 1, kind: input, shape index: {}]
  %s2 = inlined_call_operand.vmem [shape: f32[1,32], index: 2, kind: input, shape index: {}]
  %s3 = inlined_call_operand.vmem [shape: bf16[288,64], index: 3, kind: input, shape index: {}]
  %s4 = inlined_call_operand.vmem [shape: f32[1,64], index: 4, kind: input, shape index: {}]
  %s5 = inlined_call_operand.vmem [shape: bf16[576,128], index: 5, kind: input, shape index: {}]
  %s6 = inlined_call_operand.vmem [shape: f32[1,128], index: 6, kind: input, shape index: {}]
  %s7 = inlined_call_operand.vmem [shape: bf16[128,64], index: 7, kind: input, shape index: {}]
  %s8 = inlined_call_operand.vmem [shape: f32[1,64], index: 8, kind: input, shape index: {}]
  %s9 = inlined_call_operand.vmem [shape: bf16[64,128], index: 9, kind: input, shape index: {}]
  %s10 = inlined_call_operand.vmem [shape: f32[1,128], index: 10, kind: input, shape index: {}]
  %s11 = inlined_call_operand.vmem [shape: f32[16,128], index: 11, kind: output, shape index: {}]
  %s12 = sld [smem:[#allocation0]]
  $region54: #{cnn_forward.1} parent=0
    _
  %s14 = ssub.s32 1, %s12
  %s15 = scalar_select 0, %s14, %s12
  // Predicated region
  $region2: #{cnn_forward.1} parent=0 // pred_check
    _
  $region3: #{cnn_forward.1} parent=0 // pred_check_branch
    %17 = sbr.rel (0) target = $region5
  $region4: #{cnn_forward.1} parent=0 // pred_region
    _
  $region5: #{cnn_forward.1} parent=0 // pred_fallthru
    _
  // Predicated region
  $region6: #{cnn_forward.1} parent=0 // pred_check
    _
  $region7: #{cnn_forward.1} parent=0 // pred_check_branch
    %19 = sbr.rel (0) target = $region9
  $region8: #{cnn_forward.1} parent=0 // pred_region
    _
  $region9: #{cnn_forward.1} parent=0 // pred_fallthru
    _
  // Predicated region
  $region10: #{cnn_forward.1} parent=0 // pred_check
    _
  $region11: #{cnn_forward.1} parent=0 // pred_check_branch
    %21 = sbr.rel (0) target = $region13
  $region12: #{cnn_forward.1} parent=0 // pred_region
    _
  $region13: #{cnn_forward.1} parent=0 // pred_fallthru
    _
  // Predicated region
  $region14: #{cnn_forward.1} parent=0 // pred_check
    _
  $region15: #{cnn_forward.1} parent=0 // pred_check_branch
    %23 = sbr.rel (0) target = $region17
  $region16: #{cnn_forward.1} parent=0 // pred_region
    _
  $region17: #{cnn_forward.1} parent=0 // pred_fallthru
    _
  // Predicated region
  $region18: #{cnn_forward.1} parent=0 // pred_check
    _
  $region19: #{cnn_forward.1} parent=0 // pred_check_branch
    %25 = sbr.rel (0) target = $region21
  $region20: #{cnn_forward.1} parent=0 // pred_region
    _
  $region21: #{cnn_forward.1} parent=0 // pred_fallthru
    _
  // Predicated region
  $region22: #{cnn_forward.1} parent=0 // pred_check
    _
  $region23: #{cnn_forward.1} parent=0 // pred_check_branch
    %27 = sbr.rel (0) target = $region25
  $region24: #{cnn_forward.1} parent=0 // pred_region
    _
  $region25: #{cnn_forward.1} parent=0 // pred_fallthru
    _
  // Predicated region
  $region26: #{cnn_forward.1} parent=0 // pred_check
    _
  $region27: #{cnn_forward.1} parent=0 // pred_check_branch
    %29 = sbr.rel (0) target = $region29
  $region28: #{cnn_forward.1} parent=0 // pred_region
    _
  $region29: #{cnn_forward.1} parent=0 // pred_fallthru
    _
  // Predicated region
  $region30: #{cnn_forward.1} parent=0 // pred_check
    _
  $region31: #{cnn_forward.1} parent=0 // pred_check_branch
    %31 = sbr.rel (0) target = $region33
  $region32: #{cnn_forward.1} parent=0 // pred_region
    _
  $region33: #{cnn_forward.1} parent=0 // pred_fallthru
    _
  // Predicated region
  $region34: #{cnn_forward.1} parent=0 // pred_check
    _
  $region35: #{cnn_forward.1} parent=0 // pred_check_branch
    %33 = sbr.rel (0) target = $region37
  $region36: #{cnn_forward.1} parent=0 // pred_region
    _
  $region37: #{cnn_forward.1} parent=0 // pred_fallthru
    _
  // Predicated region
  $region38: #{cnn_forward.1} parent=0 // pred_check
    _
  $region39: #{cnn_forward.1} parent=0 // pred_check_branch
    %35 = sbr.rel (0) target = $region41
  $region40: #{cnn_forward.1} parent=0 // pred_region
    _
  $region41: #{cnn_forward.1} parent=0 // pred_fallthru
    _
  // Predicated region
  $region42: #{cnn_forward.1} parent=0 // pred_check
    _
  $region43: #{cnn_forward.1} parent=0 // pred_check_branch
    %37 = sbr.rel (0) target = $region45
  $region44: #{cnn_forward.1} parent=0 // pred_region
    _
  $region45: #{cnn_forward.1} parent=0 // pred_fallthru
    _
  %v39 = vld [vmem:[%s0] sm:$0xf]
  %v40 = vld [vmem:[%s0 + $0x4] sm:$0xf]
  %v41 = vld [vmem:[%s0 + $0x8] sm:$0xf]
  %v42 = vld [vmem:[%s0 + $0xc] sm:$0xf]
  %v43 = vld [vmem:[%s0 + $0x10] sm:$0xf]
  %v44 = vld [vmem:[%s0 + $0x14] sm:$0xf]
  %v45 = vld [vmem:[%s0 + $0x18] sm:$0xf]
  %v46 = vld [vmem:[%s0 + $0x1c] sm:$0xf]
  %v47 = vld [vmem:[%s0 + $0x20] sm:$0xf]
  %v48 = vld [vmem:[%s0 + $0x24] sm:$0xf]
  %v49 = vld [vmem:[%s0 + $0x28] sm:$0xf]
  %v50 = vld [vmem:[%s0 + $0x2c] sm:$0xf]
  %v51 = vld [vmem:[%s0 + $0x30] sm:$0xf]
  %v52 = vld [vmem:[%s0 + $0x34] sm:$0xf]
  %v53 = vld [vmem:[%s0 + $0x38] sm:$0xf]
  %v54 = vld [vmem:[%s0 + $0x3c] sm:$0xf]
  %v55 = vld [vmem:[%s0 + $0x40] sm:$0xf]
  %v56 = vld [vmem:[%s0 + $0x44] sm:$0xf]
  %v57 = vld [vmem:[%s0 + $0x48] sm:$0xf]
  %v58 = vld [vmem:[%s0 + $0x4c] sm:$0xf]
  %v59 = vld [vmem:[%s0 + $0x50] sm:$0xf]
  %v60 = vld [vmem:[%s0 + $0x54] sm:$0xf]
  %v61 = vld [vmem:[%s0 + $0x58] sm:$0xf]
  %v62 = vld [vmem:[%s0 + $0x5c] sm:$0xf]
  %v63 = vld [vmem:[%s0 + $0x60] sm:$0xf]
  %v64 = vld [vmem:[%s0 + $0x64] sm:$0xf]
  %v65 = vld [vmem:[%s0 + $0x68] sm:$0xf]
  %v66 = vld [vmem:[%s0 + $0x6c] sm:$0xf]
  %v67 = vld [vmem:[%s0 + $0x70] sm:$0xf]
  %v68 = vld [vmem:[%s0 + $0x74] sm:$0xf]
  %v69 = vld [vmem:[%s0 + $0x78] sm:$0xf]
  %v70 = vld [vmem:[%s0 + $0x7c] sm:$0xf]
  %v71 = vld [vmem:[%s0 + $0x80] sm:$0xf]
  %v72 = vld [vmem:[%s0 + $0x84] sm:$0xf]
  %v73 = vld [vmem:[%s0 + $0x88] sm:$0xf]
  %v74 = vld [vmem:[%s0 + $0x8c] sm:$0xf]
  %v75 = vld [vmem:[%s0 + $0x90] sm:$0xf]
  %v76 = vld [vmem:[%s0 + $0x94] sm:$0xf]
  %v77 = vld [vmem:[%s0 + $0x98] sm:$0xf]
  %v78 = vld [vmem:[%s0 + $0x9c] sm:$0xf]
  %v79 = vld [vmem:[%s0 + $0xa0] sm:$0xf]
  %v80 = vld [vmem:[%s0 + $0xa4] sm:$0xf]
  %v81 = vld [vmem:[%s0 + $0xa8] sm:$0xf]
  %v82 = vld [vmem:[%s0 + $0xac] sm:$0xf]
  %v83 = vld [vmem:[%s0 + $0xb0] sm:$0xf]
  %v84 = vld [vmem:[%s0 + $0xb4] sm:$0xf]
  %v85 = vld [vmem:[%s0 + $0xb8] sm:$0xf]
  %v86 = vld [vmem:[%s0 + $0xbc] sm:$0xf]
  %v87 = vld [vmem:[%s0 + $0xc0] sm:$0xf]
  %v88 = vld [vmem:[%s0 + $0xc4] sm:$0xf]
  %v89 = vld [vmem:[%s0 + $0xc8] sm:$0xf]
  %v90 = vld [vmem:[%s0 + $0xcc] sm:$0xf]
  %v91 = vld [vmem:[%s0 + $0xd0] sm:$0xf]
  %v92 = vld [vmem:[%s0 + $0xd4] sm:$0xf]
  %v93 = vld [vmem:[%s0 + $0xd8] sm:$0xf]
  %v94 = vld [vmem:[%s0 + $0xdc] sm:$0xf]
  %v95 = vld [vmem:[%s0 + $0xe0] sm:$0xf]
  %v96 = vld [vmem:[%s0 + $0xe4] sm:$0xf]
  %v97 = vld [vmem:[%s0 + $0xe8] sm:$0xf]
  %v98 = vld [vmem:[%s0 + $0xec] sm:$0xf]
  %v99 = vld [vmem:[%s0 + $0xf0] sm:$0xf]
  %v100 = vld [vmem:[%s0 + $0xf4] sm:$0xf]
  %v101 = vld [vmem:[%s0 + $0xf8] sm:$0xf]
  %v102 = vld [vmem:[%s0 + $0xfc] sm:$0xf]
  %v103 = vld [vmem:[%s0 + $0x100] sm:$0xf]
  %v104 = vld [vmem:[%s0 + $0x104] sm:$0xf]
  %v105 = vld [vmem:[%s0 + $0x108] sm:$0xf]
  %v106 = vld [vmem:[%s0 + $0x10c] sm:$0xf]
  %v107 = vld [vmem:[%s0 + $0x110] sm:$0xf]
  %v108 = vld [vmem:[%s0 + $0x114] sm:$0xf]
  %v109 = vld [vmem:[%s0 + $0x118] sm:$0xf]
  %v110 = vld [vmem:[%s0 + $0x11c] sm:$0xf]
  %v111 = vld [vmem:[%s0 + $0x120] sm:$0xf]
  %v112 = vld [vmem:[%s0 + $0x124] sm:$0xf]
  %v113 = vld [vmem:[%s0 + $0x128] sm:$0xf]
  %v114 = vld [vmem:[%s0 + $0x12c] sm:$0xf]
  %v115 = vld [vmem:[%s0 + $0x130] sm:$0xf]
  %v116 = vld [vmem:[%s0 + $0x134] sm:$0xf]
  %v117 = vld [vmem:[%s0 + $0x138] sm:$0xf]
  %v118 = vld [vmem:[%s0 + $0x13c] sm:$0xf]
  %v119 = vld [vmem:[%s0 + $0x140] sm:$0xf]
  %v120 = vld [vmem:[%s0 + $0x144] sm:$0xf]
  %v121 = vld [vmem:[%s0 + $0x148] sm:$0xf]
  %v122 = vld [vmem:[%s0 + $0x14c] sm:$0xf]
  %v123 = vld [vmem:[%s0 + $0x150] sm:$0xf]
  %v124 = vld [vmem:[%s0 + $0x154] sm:$0xf]
  %v125 = vld [vmem:[%s0 + $0x158] sm:$0xf]
  %v126 = vld [vmem:[%s0 + $0x15c] sm:$0xf]
  %v127 = vld [vmem:[%s0 + $0x160] sm:$0xf]
  %v128 = vld [vmem:[%s0 + $0x164] sm:$0xf]
  %v129 = vld [vmem:[%s0 + $0x168] sm:$0xf]
  %v130 = vld [vmem:[%s0 + $0x16c] sm:$0xf]
  %v131 = vld [vmem:[%s0 + $0x170] sm:$0xf]
  %v132 = vld [vmem:[%s0 + $0x174] sm:$0xf]
  %v133 = vld [vmem:[%s0 + $0x178] sm:$0xf]
  %v134 = vld [vmem:[%s0 + $0x17c] sm:$0xf]
  %v135 = vld [vmem:[%s0 + $0x180] sm:$0xf]
  %v136 = vld [vmem:[%s0 + $0x184] sm:$0xf]
  %v137 = vld [vmem:[%s1] sm:$0xf]
  %v138 = vld [vmem:[%s1 + $0x4] sm:$0xf]
  %v139 = vld [vmem:[%s2] sm:$0x1]
  %v141 = vlaneseq
  %v142 = vshrl.u32 %v141, 7
  %v143 = vsub.s32 0, %v142
  %v144 = vrot.slane %v139, %v143
  %v244 = vunpack.c.l.b16 %v39
  %v245 = vunpack.c.l.b16 %v40
  %v246 = vunpack.c.l.b16 %v41
  %v247 = vunpack.c.l.b16 %v42
  %v248 = vunpack.c.l.b16 %v43
  %v249 = vunpack.c.l.b16 %v44
  %v250 = vunpack.c.l.b16 %v45
  %v251 = vunpack.c.l.b16 %v46
  %v252 = vunpack.c.l.b16 %v47
  %v253 = vunpack.c.l.b16 %v48
  %v254 = vunpack.c.l.b16 %v49
  %v255 = vunpack.c.l.b16 %v50
  %v256 = vunpack.c.l.b16 %v51
  %v257 = vunpack.c.l.b16 %v52
  %v258 = vunpack.c.l.b16 %v53
  %v259 = vunpack.c.l.b16 %v54
  %v260 = vunpack.c.l.b16 %v55
  %v261 = vunpack.c.l.b16 %v56
  %v262 = vunpack.c.l.b16 %v57
  %v263 = vunpack.c.l.b16 %v58
  %v264 = vunpack.c.l.b16 %v59
  %v265 = vunpack.c.l.b16 %v60
  %v266 = vunpack.c.l.b16 %v61
  %v267 = vunpack.c.l.b16 %v62
  %v268 = vunpack.c.l.b16 %v63
  %v269 = vunpack.c.l.b16 %v64
  %v270 = vunpack.c.l.b16 %v65
  %v271 = vunpack.c.l.b16 %v66
  %v272 = vunpack.c.l.b16 %v67
  %v273 = vunpack.c.l.b16 %v68
  %v274 = vunpack.c.l.b16 %v69
  %v275 = vunpack.c.l.b16 %v70
  %v276 = vunpack.c.l.b16 %v71
  %v277 = vunpack.c.l.b16 %v72
  %v278 = vunpack.c.l.b16 %v73
  %v279 = vunpack.c.l.b16 %v74
  %v280 = vunpack.c.l.b16 %v75
  %v281 = vunpack.c.l.b16 %v76
  %v282 = vunpack.c.l.b16 %v77
  %v283 = vunpack.c.l.b16 %v78
  %v284 = vunpack.c.l.b16 %v79
  %v285 = vunpack.c.l.b16 %v80
  %v286 = vunpack.c.l.b16 %v81
  %v287 = vunpack.c.l.b16 %v82
  %v288 = vunpack.c.l.b16 %v83
  %v289 = vunpack.c.l.b16 %v84
  %v290 = vunpack.c.l.b16 %v85
  %v291 = vunpack.c.l.b16 %v86
  %v292 = vunpack.c.l.b16 %v87
  %v293 = vunpack.c.l.b16 %v88
  %v294 = vunpack.c.l.b16 %v89
  %v295 = vunpack.c.l.b16 %v90
  %v296 = vunpack.c.l.b16 %v91
  %v297 = vunpack.c.l.b16 %v92
  %v298 = vunpack.c.l.b16 %v93
  %v299 = vunpack.c.l.b16 %v94
  %v300 = vunpack.c.l.b16 %v95
  %v301 = vunpack.c.l.b16 %v96
  %v302 = vunpack.c.l.b16 %v97
  %v303 = vunpack.c.l.b16 %v98
  %v304 = vunpack.c.l.b16 %v99
  %v305 = vunpack.c.l.b16 %v100
  %v306 = vunpack.c.l.b16 %v101
  %v307 = vunpack.c.l.b16 %v102
  %v308 = vunpack.c.l.b16 %v103
  %v309 = vunpack.c.l.b16 %v104
  %v310 = vunpack.c.l.b16 %v105
  %v311 = vunpack.c.l.b16 %v106
  %v312 = vunpack.c.l.b16 %v107
  %v313 = vunpack.c.l.b16 %v108
  %v314 = vunpack.c.l.b16 %v109
  %v315 = vunpack.c.l.b16 %v110
  %v316 = vunpack.c.l.b16 %v111
  %v317 = vunpack.c.l.b16 %v112
  %v318 = vunpack.c.l.b16 %v113
  %v319 = vunpack.c.l.b16 %v114
  %v320 = vunpack.c.l.b16 %v115
  %v321 = vunpack.c.l.b16 %v116
  %v322 = vunpack.c.l.b16 %v117
  %v323 = vunpack.c.l.b16 %v118
  %v324 = vunpack.c.l.b16 %v119
  %v325 = vunpack.c.l.b16 %v120
  %v326 = vunpack.c.l.b16 %v121
  %v327 = vunpack.c.l.b16 %v122
  %v328 = vunpack.c.l.b16 %v123
  %v329 = vunpack.c.l.b16 %v124
  %v330 = vunpack.c.l.b16 %v125
  %v331 = vunpack.c.l.b16 %v126
  %v332 = vunpack.c.l.b16 %v127
  %v333 = vunpack.c.l.b16 %v128
  %v334 = vunpack.c.l.b16 %v129
  %v335 = vunpack.c.l.b16 %v130
  %v336 = vunpack.c.l.b16 %v131
  %v337 = vunpack.c.l.b16 %v132
  %v338 = vunpack.c.l.b16 %v133
  %v339 = vunpack.c.l.b16 %v134
  %v340 = vunpack.c.l.b16 %v135
  %v341 = vunpack.c.l.b16 %v136
  %v342 = vpack.c.b16 %v245, %v244
  %v343 = vpack.c.b16 %v247, %v246
  %v344 = vpack.c.b16 %v249, %v248
  %v345 = vpack.c.b16 %v251, %v250
  %v346 = vpack.c.b16 %v253, %v252
  %v347 = vpack.c.b16 %v255, %v254
  %v348 = vpack.c.b16 %v257, %v256
  %v349 = vpack.c.b16 %v259, %v258
  %v350 = vpack.c.b16 %v261, %v260
  %v351 = vpack.c.b16 %v263, %v262
  %v352 = vpack.c.b16 %v265, %v264
  %v353 = vpack.c.b16 %v267, %v266
  %v354 = vpack.c.b16 %v269, %v268
  %v355 = vpack.c.b16 %v271, %v270
  %v356 = vpack.c.b16 %v273, %v272
  %v357 = vpack.c.b16 %v275, %v274
  %v358 = vpack.c.b16 %v277, %v276
  %v359 = vpack.c.b16 %v279, %v278
  %v360 = vpack.c.b16 %v281, %v280
  %v361 = vpack.c.b16 %v283, %v282
  %v362 = vpack.c.b16 %v285, %v284
  %v363 = vpack.c.b16 %v287, %v286
  %v364 = vpack.c.b16 %v289, %v288
  %v365 = vpack.c.b16 %v291, %v290
  %v366 = vpack.c.b16 %v293, %v292
  %v367 = vpack.c.b16 %v295, %v294
  %v368 = vpack.c.b16 %v297, %v296
  %v369 = vpack.c.b16 %v299, %v298
  %v370 = vpack.c.b16 %v301, %v300
  %v371 = vpack.c.b16 %v303, %v302
  %v372 = vpack.c.b16 %v305, %v304
  %v373 = vpack.c.b16 %v307, %v306
  %v374 = vpack.c.b16 %v309, %v308
  %v375 = vpack.c.b16 %v311, %v310
  %v376 = vpack.c.b16 %v313, %v312
  %v377 = vpack.c.b16 %v315, %v314
  %v378 = vpack.c.b16 %v317, %v316
  %v379 = vpack.c.b16 %v319, %v318
  %v380 = vpack.c.b16 %v321, %v320
  %v381 = vpack.c.b16 %v323, %v322
  %v382 = vpack.c.b16 %v325, %v324
  %v383 = vpack.c.b16 %v327, %v326
  %v384 = vpack.c.b16 %v329, %v328
  %v385 = vpack.c.b16 %v331, %v330
  %v386 = vpack.c.b16 %v333, %v332
  %v387 = vpack.c.b16 %v335, %v334
  %v388 = vpack.c.b16 %v337, %v336
  %v389 = vpack.c.b16 %v339, %v338
  %v390 = vpack.c.b16 %v341, %v340
  %v393 = vunpack.c.l.b16 %v137
  %v394 = vunpack.c.l.b16 %v138
  %v395 = vpack.c.b16 %v394, %v393
  %vm397 = vcmask 130048
  %v399 = vsel %vm397, %v342, 0
  %v402 = vsel %vm397, %v343, 0
  %v405 = vsel %vm397, %v344, 0
  %v408 = vsel %vm397, %v345, 0
  %v411 = vsel %vm397, %v346, 0
  %v414 = vsel %vm397, %v347, 0
  %v417 = vsel %vm397, %v348, 0
  %v420 = vsel %vm397, %v349, 0
  %v423 = vsel %vm397, %v350, 0
  %v426 = vsel %vm397, %v351, 0
  %v429 = vsel %vm397, %v352, 0
  %v432 = vsel %vm397, %v353, 0
  %v435 = vsel %vm397, %v354, 0
  %v438 = vsel %vm397, %v355, 0
  %v441 = vsel %vm397, %v356, 0
  %v444 = vsel %vm397, %v357, 0
  %v447 = vsel %vm397, %v358, 0
  %v450 = vsel %vm397, %v359, 0
  %v453 = vsel %vm397, %v360, 0
  %v456 = vsel %vm397, %v361, 0
  %v459 = vsel %vm397, %v362, 0
  %v462 = vsel %vm397, %v363, 0
  %v465 = vsel %vm397, %v364, 0
  %v468 = vsel %vm397, %v365, 0
  %v471 = vsel %vm397, %v366, 0
  %v474 = vsel %vm397, %v367, 0
  %v477 = vsel %vm397, %v368, 0
  %v480 = vsel %vm397, %v369, 0
  %v483 = vsel %vm397, %v370, 0
  %v486 = vsel %vm397, %v371, 0
  %v489 = vsel %vm397, %v372, 0
  %v492 = vsel %vm397, %v373, 0
  %v495 = vsel %vm397, %v374, 0
  %v498 = vsel %vm397, %v375, 0
  %v501 = vsel %vm397, %v376, 0
  %v504 = vsel %vm397, %v377, 0
  %v507 = vsel %vm397, %v378, 0
  %v510 = vsel %vm397, %v379, 0
  %v513 = vsel %vm397, %v380, 0
  %v516 = vsel %vm397, %v381, 0
  %v519 = vsel %vm397, %v382, 0
  %v522 = vsel %vm397, %v383, 0
  %v525 = vsel %vm397, %v384, 0
  %v528 = vsel %vm397, %v385, 0
  %v531 = vsel %vm397, %v386, 0
  %v534 = vsel %vm397, %v387, 0
  %v537 = vsel %vm397, %v388, 0
  %v540 = vsel %vm397, %v389, 0
  %v543 = vsel %vm397, %v390, 0
  %545 = vmatprep.subr.bf16.mxu0 0
  %546 = vmatpush1.bf16.msra.mxu0 %v395
  %547 = vmatprep.subr.bf16.mxu0 0
  %548 = vmatpush1.bf16.msra.mxu0 0
  %549 = vmatprep.subr.bf16.mxu0 0
  %550 = vmatpush1.bf16.msra.mxu0 0
  %551 = vmatprep.subr.bf16.mxu0 0
  %552 = vmatpush1.bf16.msra.mxu0 0
  %553 = vmatprep.subr.bf16.mxu0 0
  %554 = vmatpush1.bf16.msra.mxu0 0
  %555 = vmatprep.subr.bf16.mxu0 0
  %556 = vmatpush1.bf16.msra.mxu0 0
  %557 = vmatprep.subr.bf16.mxu0 0
  %558 = vmatpush1.bf16.msra.mxu0 0
  %559 = vmatprep.subr.bf16.mxu0 0
  %560 = vmatpush1.bf16.msra.mxu0 0
  %561 = vmatprep.subr.bf16.mxu0 0
  %562 = vmatpush1.bf16.msra.mxu0 0
  %563 = vmatprep.subr.bf16.mxu0 0
  %564 = vmatpush1.bf16.msra.mxu0 0
  %565 = vmatprep.subr.bf16.mxu0 0
  %566 = vmatpush1.bf16.msra.mxu0 0
  %567 = vmatprep.subr.bf16.mxu0 0
  %568 = vmatpush1.bf16.msra.mxu0 0
  %569 = vmatprep.subr.bf16.mxu0 0
  %570 = vmatpush1.bf16.msra.mxu0 0
  %571 = vmatprep.subr.bf16.mxu0 0
  %572 = vmatpush1.bf16.msra.mxu0 0
  %573 = vmatprep.subr.bf16.mxu0 0
  %574 = vmatpush1.bf16.msra.mxu0 0
  %575 = vmatprep.subr.bf16.mxu0 0
  %576 = vmatpush1.bf16.msra.mxu0 0
  %577 = vmatprep.mubr.bf16.mxu0 0
  %578 = vmatmul.mubr.bf16.gmra.mrb[0].mxu0 %v399
  %v579 = vpop.f32.mrb[0].mxu0
  %v580 = vadd.f32 %v144, %v579
  %v581 = vpop.f32.mrb[0].mxu0
  %v582 = vpop.f32.mrb[0].mxu0
  %v583 = vadd.f32 %v144, %v582
  %v584 = vpop.f32.mrb[0].mxu0
  %585 = vmatprep.mubr.bf16.mxu0 0
  %586 = vmatmul.mubr.bf16.gmra.mrb[0].mxu0 %v402
  %v587 = vpop.f32.mrb[0].mxu0
  %v588 = vadd.f32 %v144, %v587
  %v589 = vpop.f32.mrb[0].mxu0
  %v590 = vpop.f32.mrb[0].mxu0
  %v591 = vadd.f32 %v144, %v590
  %v592 = vpop.f32.mrb[0].mxu0
  %593 = vmatprep.mubr.bf16.mxu0 0
  %594 = vmatmul.mubr.bf16.gmra.mrb[0].mxu0 %v405
  %v595 = vpop.f32.mrb[0].mxu0
  %v596 = vadd.f32 %v144, %v595
  %v597 = vpop.f32.mrb[0].mxu0
  %v598 = vpop.f32.mrb[0].mxu0
  %v599 = vadd.f32 %v144, %v598
  %v600 = vpop.f32.mrb[0].mxu0
  %601 = vmatprep.mubr.bf16.mxu0 0
  %602 = vmatmul.mubr.bf16.gmra.mrb[0].mxu0 %v408
  %v603 = vpop.f32.mrb[0].mxu0
  %v604 = vadd.f32 %v144, %v603
  %v605 = vpop.f32.mrb[0].mxu0
  %v606 = vpop.f32.mrb[0].mxu0
  %v607 = vadd.f32 %v144, %v606
  %v608 = vpop.f32.mrb[0].mxu0
  %609 = vmatprep.mubr.bf16.mxu0 0
  %610 = vmatmul.mubr.bf16.gmra.mrb[0].mxu0 %v411
  %v611 = vpop.f32.mrb[0].mxu0
  %v612 = vadd.f32 %v144, %v611
  %v613 = vpop.f32.mrb[0].mxu0
  %v614 = vpop.f32.mrb[0].mxu0
  %v615 = vadd.f32 %v144, %v614
  %v616 = vpop.f32.mrb[0].mxu0
  %617 = vmatprep.mubr.bf16.mxu0 0
  %618 = vmatmul.mubr.bf16.gmra.mrb[0].mxu0 %v414
  %v619 = vpop.f32.mrb[0].mxu0
  %v620 = vadd.f32 %v144, %v619
  %v621 = vpop.f32.mrb[0].mxu0
  %v622 = vpop.f32.mrb[0].mxu0
  %v623 = vadd.f32 %v144, %v622
  %v624 = vpop.f32.mrb[0].mxu0
  %625 = vmatprep.mubr.bf16.mxu0 0
  %626 = vmatmul.mubr.bf16.gmra.mrb[0].mxu0 %v417
  %v627 = vpop.f32.mrb[0].mxu0
  %v628 = vadd.f32 %v144, %v627
  %v629 = vpop.f32.mrb[0].mxu0
  %v630 = vpop.f32.mrb[0].mxu0
  %v631 = vadd.f32 %v144, %v630
  %v632 = vpop.f32.mrb[0].mxu0
  %633 = vmatprep.mubr.bf16.mxu0 0
  %634 = vmatmul.mubr.bf16.gmra.mrb[0].mxu0 %v420
  %v635 = vpop.f32.mrb[0].mxu0
  %v636 = vadd.f32 %v144, %v635
  %v637 = vpop.f32.mrb[0].mxu0
  %v638 = vpop.f32.mrb[0].mxu0
  %v639 = vadd.f32 %v144, %v638
  %v640 = vpop.f32.mrb[0].mxu0
  %641 = vmatprep.mubr.bf16.mxu0 0
  %642 = vmatmul.mubr.bf16.gmra.mrb[0].mxu0 %v423
  %v643 = vpop.f32.mrb[0].mxu0
  %v644 = vadd.f32 %v144, %v643
  %v645 = vpop.f32.mrb[0].mxu0
  %v646 = vpop.f32.mrb[0].mxu0
  %v647 = vadd.f32 %v144, %v646
  %v648 = vpop.f32.mrb[0].mxu0
  %649 = vmatprep.mubr.bf16.mxu0 0
  %650 = vmatmul.mubr.bf16.gmra.mrb[0].mxu0 %v426
  %v651 = vpop.f32.mrb[0].mxu0
  %v652 = vadd.f32 %v144, %v651
  %v653 = vpop.f32.mrb[0].mxu0
  %v654 = vpop.f32.mrb[0].mxu0
  %v655 = vadd.f32 %v144, %v654
  %v656 = vpop.f32.mrb[0].mxu0
  %657 = vmatprep.mubr.bf16.mxu0 0
  %658 = vmatmul.mubr.bf16.gmra.mrb[0].mxu0 %v429
  %v659 = vpop.f32.mrb[0].mxu0
  %v660 = vadd.f32 %v144, %v659
  %v661 = vpop.f32.mrb[0].mxu0
  %v662 = vpop.f32.mrb[0].mxu0
  %v663 = vadd.f32 %v144, %v662
  %v664 = vpop.f32.mrb[0].mxu0
  %665 = vmatprep.mubr.bf16.mxu0 0
  %666 = vmatmul.mubr.bf16.gmra.mrb[0].mxu0 %v432
  %v667 = vpop.f32.mrb[0].mxu0
  %v668 = vadd.f32 %v144, %v667
  %v669 = vpop.f32.mrb[0].mxu0
  %v670 = vpop.f32.mrb[0].mxu0
  %v671 = vadd.f32 %v144, %v670
  %v672 = vpop.f32.mrb[0].mxu0
  %673 = vmatprep.mubr.bf16.mxu0 0
  %674 = vmatmul.mubr.bf16.gmra.mrb[0].mxu0 %v435
  %v675 = vpop.f32.mrb[0].mxu0
  %v676 = vadd.f32 %v144, %v675
  %v677 = vpop.f32.mrb[0].mxu0
  %v678 = vpop.f32.mrb[0].mxu0
  %v679 = vadd.f32 %v144, %v678
  %v680 = vpop.f32.mrb[0].mxu0
  %681 = vmatprep.mubr.bf16.mxu0 0
  %682 = vmatmul.mubr.bf16.gmra.mrb[0].mxu0 %v438
  %v683 = vpop.f32.mrb[0].mxu0
  %v684 = vadd.f32 %v144, %v683
  %v685 = vpop.f32.mrb[0].mxu0
  %v686 = vpop.f32.mrb[0].mxu0
  %v687 = vadd.f32 %v144, %v686
  %v688 = vpop.f32.mrb[0].mxu0
  %689 = vmatprep.mubr.bf16.mxu0 0
  %690 = vmatmul.mubr.bf16.gmra.mrb[0].mxu0 %v441
  %v691 = vpop.f32.mrb[0].mxu0
  %v692 = vadd.f32 %v144, %v691
  %v693 = vpop.f32.mrb[0].mxu0
  %v694 = vpop.f32.mrb[0].mxu0
  %v695 = vadd.f32 %v144, %v694
  %v696 = vpop.f32.mrb[0].mxu0
  %697 = vmatprep.mubr.bf16.mxu0 0
  %698 = vmatmul.mubr.bf16.gmra.mrb[0].mxu0 %v444
  %v699 = vpop.f32.mrb[0].mxu0
  %v700 = vadd.f32 %v144, %v699
  %v701 = vpop.f32.mrb[0].mxu0
  %v702 = vpop.f32.mrb[0].mxu0
  %v703 = vadd.f32 %v144, %v702
  %v704 = vpop.f32.mrb[0].mxu0
  %705 = vmatprep.mubr.bf16.mxu0 0
  %706 = vmatmul.mubr.bf16.gmra.mrb[0].mxu0 %v447
  %v707 = vpop.f32.mrb[0].mxu0
  %v708 = vadd.f32 %v144, %v707
  %v709 = vpop.f32.mrb[0].mxu0
  %v710 = vpop.f32.mrb[0].mxu0
  %v711 = vadd.f32 %v144, %v710
  %v712 = vpop.f32.mrb[0].mxu0
  %713 = vmatprep.mubr.bf16.mxu0 0
  %714 = vmatmul.mubr.bf16.gmra.mrb[0].mxu0 %v450
  %v715 = vpop.f32.mrb[0].mxu0
  %v716 = vadd.f32 %v144, %v715
  %v717 = vpop.f32.mrb[0].mxu0
  %v718 = vpop.f32.mrb[0].mxu0
  %v719 = vadd.f32 %v144, %v718
  %v720 = vpop.f32.mrb[0].mxu0
  %721 = vmatprep.mubr.bf16.mxu0 0
  %722 = vmatmul.mubr.bf16.gmra.mrb[0].mxu0 %v453
  %v723 = vpop.f32.mrb[0].mxu0
  %v724 = vadd.f32 %v144, %v723
  %v725 = vpop.f32.mrb[0].mxu0
  %v726 = vpop.f32.mrb[0].mxu0
  %v727 = vadd.f32 %v144, %v726
  %v728 = vpop.f32.mrb[0].mxu0
  %729 = vmatprep.mubr.bf16.mxu0 0
  %730 = vmatmul.mubr.bf16.gmra.mrb[0].mxu0 %v456
  %v731 = vpop.f32.mrb[0].mxu0
  %v732 = vadd.f32 %v144, %v731
  %v733 = vpop.f32.mrb[0].mxu0
  %v734 = vpop.f32.mrb[0].mxu0
  %v735 = vadd.f32 %v144, %v734
  %v736 = vpop.f32.mrb[0].mxu0
  %737 = vmatprep.mubr.bf16.mxu0 0
  %738 = vmatmul.mubr.bf16.gmra.mrb[0].mxu0 %v459
  %v739 = vpop.f32.mrb[0].mxu0
  %v740 = vadd.f32 %v144, %v739
  %v741 = vpop.f32.mrb[0].mxu0
  %v742 = vpop.f32.mrb[0].mxu0
  %v743 = vadd.f32 %v144, %v742
  %v744 = vpop.f32.mrb[0].mxu0
  %745 = vmatprep.mubr.bf16.mxu0 0
  %746 = vmatmul.mubr.bf16.gmra.mrb[0].mxu0 %v462
  %v747 = vpop.f32.mrb[0].mxu0
  %v748 = vadd.f32 %v144, %v747
  %v749 = vpop.f32.mrb[0].mxu0
  %v750 = vpop.f32.mrb[0].mxu0
  %v751 = vadd.f32 %v144, %v750
  %v752 = vpop.f32.mrb[0].mxu0
  %753 = vmatprep.mubr.bf16.mxu0 0
  %754 = vmatmul.mubr.bf16.gmra.mrb[0].mxu0 %v465
  %v755 = vpop.f32.mrb[0].mxu0
  %v756 = vadd.f32 %v144, %v755
  %v757 = vpop.f32.mrb[0].mxu0
  %v758 = vpop.f32.mrb[0].mxu0
  %v759 = vadd.f32 %v144, %v758
  %v760 = vpop.f32.mrb[0].mxu0
  %761 = vmatprep.mubr.bf16.mxu0 0
  %762 = vmatmul.mubr.bf16.gmra.mrb[0].mxu0 %v468
  %v763 = vpop.f32.mrb[0].mxu0
  %v764 = vadd.f32 %v144, %v763
  %v765 = vpop.f32.mrb[0].mxu0
  %v766 = vpop.f32.mrb[0].mxu0
  %v767 = vadd.f32 %v144, %v766
  %v768 = vpop.f32.mrb[0].mxu0
  %769 = vmatprep.mubr.bf16.mxu0 0
  %770 = vmatmul.mubr.bf16.gmra.mrb[0].mxu0 %v471
  %v771 = vpop.f32.mrb[0].mxu0
  %v772 = vadd.f32 %v144, %v771
  %v773 = vpop.f32.mrb[0].mxu0
  %v774 = vpop.f32.mrb[0].mxu0
  %v775 = vadd.f32 %v144, %v774
  %v776 = vpop.f32.mrb[0].mxu0
  %777 = vmatprep.mubr.bf16.mxu0 0
  %778 = vmatmul.mubr.bf16.gmra.mrb[0].mxu0 %v474
  %v779 = vpop.f32.mrb[0].mxu0
  %v780 = vadd.f32 %v144, %v779
  %v781 = vpop.f32.mrb[0].mxu0
  %v782 = vpop.f32.mrb[0].mxu0
  %v783 = vadd.f32 %v144, %v782
  %v784 = vpop.f32.mrb[0].mxu0
  %785 = vmatprep.mubr.bf16.mxu0 0
  %786 = vmatmul.mubr.bf16.gmra.mrb[0].mxu0 %v477
  %v787 = vpop.f32.mrb[0].mxu0
  %v788 = vadd.f32 %v144, %v787
  %v789 = vpop.f32.mrb[0].mxu0
  %v790 = vpop.f32.mrb[0].mxu0
  %v791 = vadd.f32 %v144, %v790
  %v792 = vpop.f32.mrb[0].mxu0
  %793 = vmatprep.mubr.bf16.mxu0 0
  %794 = vmatmul.mubr.bf16.gmra.mrb[0].mxu0 %v480
  %v795 = vpop.f32.mrb[0].mxu0
  %v796 = vadd.f32 %v144, %v795
  %v797 = vpop.f32.mrb[0].mxu0
  %v798 = vpop.f32.mrb[0].mxu0
  %v799 = vadd.f32 %v144, %v798
  %v800 = vpop.f32.mrb[0].mxu0
  %801 = vmatprep.mubr.bf16.mxu0 0
  %802 = vmatmul.mubr.bf16.gmra.mrb[0].mxu0 %v483
  %v803 = vpop.f32.mrb[0].mxu0
  %v804 = vadd.f32 %v144, %v803
  %v805 = vpop.f32.mrb[0].mxu0
  %v806 = vpop.f32.mrb[0].mxu0
  %v807 = vadd.f32 %v144, %v806
  %v808 = vpop.f32.mrb[0].mxu0
  %809 = vmatprep.mubr.bf16.mxu0 0
  %810 = vmatmul.mubr.bf16.gmra.mrb[0].mxu0 %v486
  %v811 = vpop.f32.mrb[0].mxu0
  %v812 = vadd.f32 %v144, %v811
  %v813 = vpop.f32.mrb[0].mxu0
  %v814 = vpop.f32.mrb[0].mxu0
  %v815 = vadd.f32 %v144, %v814
  %v816 = vpop.f32.mrb[0].mxu0
  %817 = vmatprep.mubr.bf16.mxu0 0
  %818 = vmatmul.mubr.bf16.gmra.mrb[0].mxu0 %v489
  %v819 = vpop.f32.mrb[0].mxu0
  %v820 = vadd.f32 %v144, %v819
  %v821 = vpop.f32.mrb[0].mxu0
  %v822 = vpop.f32.mrb[0].mxu0
  %v823 = vadd.f32 %v144, %v822
  %v824 = vpop.f32.mrb[0].mxu0
  %825 = vmatprep.mubr.bf16.mxu0 0
  %826 = vmatmul.mubr.bf16.gmra.mrb[0].mxu0 %v492
  %v827 = vpop.f32.mrb[0].mxu0
  %v828 = vadd.f32 %v144, %v827
  %v829 = vpop.f32.mrb[0].mxu0
  %v830 = vpop.f32.mrb[0].mxu0
  %v831 = vadd.f32 %v144, %v830
  %v832 = vpop.f32.mrb[0].mxu0
  %833 = vmatprep.mubr.bf16.mxu0 0
  %834 = vmatmul.mubr.bf16.gmra.mrb[0].mxu0 %v495
  %v835 = vpop.f32.mrb[0].mxu0
  %v836 = vadd.f32 %v144, %v835
  %v837 = vpop.f32.mrb[0].mxu0
  %v838 = vpop.f32.mrb[0].mxu0
  %v839 = vadd.f32 %v144, %v838
  %v840 = vpop.f32.mrb[0].mxu0
  %841 = vmatprep.mubr.bf16.mxu0 0
  %842 = vmatmul.mubr.bf16.gmra.mrb[0].mxu0 %v498
  %v843 = vpop.f32.mrb[0].mxu0
  %v844 = vadd.f32 %v144, %v843
  %v845 = vpop.f32.mrb[0].mxu0
  %v846 = vpop.f32.mrb[0].mxu0
  %v847 = vadd.f32 %v144, %v846
  %v848 = vpop.f32.mrb[0].mxu0
  %849 = vmatprep.mubr.bf16.mxu0 0
  %850 = vmatmul.mubr.bf16.gmra.mrb[0].mxu0 %v501
  %v851 = vpop.f32.mrb[0].mxu0
  %v852 = vadd.f32 %v144, %v851
  %v853 = vpop.f32.mrb[0].mxu0
  %v854 = vpop.f32.mrb[0].mxu0
  %v855 = vadd.f32 %v144, %v854
  %v856 = vpop.f32.mrb[0].mxu0
  %857 = vmatprep.mubr.bf16.mxu0 0
  %858 = vmatmul.mubr.bf16.gmra.mrb[0].mxu0 %v504
  %v859 = vpop.f32.mrb[0].mxu0
  %v860 = vadd.f32 %v144, %v859
  %v861 = vpop.f32.mrb[0].mxu0
  %v862 = vpop.f32.mrb[0].mxu0
  %v863 = vadd.f32 %v144, %v862
  %v864 = vpop.f32.mrb[0].mxu0
  %865 = vmatprep.mubr.bf16.mxu0 0
  %866 = vmatmul.mubr.bf16.gmra.mrb[0].mxu0 %v507
  %v867 = vpop.f32.mrb[0].mxu0
  %v868 = vadd.f32 %v144, %v867
  %v869 = vpop.f32.mrb[0].mxu0
  %v870 = vpop.f32.mrb[0].mxu0
  %v871 = vadd.f32 %v144, %v870
  %v872 = vpop.f32.mrb[0].mxu0
  %873 = vmatprep.mubr.bf16.mxu0 0
  %874 = vmatmul.mubr.bf16.gmra.mrb[0].mxu0 %v510
  %v875 = vpop.f32.mrb[0].mxu0
  %v876 = vadd.f32 %v144, %v875
  %v877 = vpop.f32.mrb[0].mxu0
  %v878 = vpop.f32.mrb[0].mxu0
  %v879 = vadd.f32 %v144, %v878
  %v880 = vpop.f32.mrb[0].mxu0
  %881 = vmatprep.mubr.bf16.mxu0 0
  %882 = vmatmul.mubr.bf16.gmra.mrb[0].mxu0 %v513
  %v883 = vpop.f32.mrb[0].mxu0
  %v884 = vadd.f32 %v144, %v883
  %v885 = vpop.f32.mrb[0].mxu0
  %v886 = vpop.f32.mrb[0].mxu0
  %v887 = vadd.f32 %v144, %v886
  %v888 = vpop.f32.mrb[0].mxu0
  %889 = vmatprep.mubr.bf16.mxu0 0
  %890 = vmatmul.mubr.bf16.gmra.mrb[0].mxu0 %v516
  %v891 = vpop.f32.mrb[0].mxu0
  %v892 = vadd.f32 %v144, %v891
  %v893 = vpop.f32.mrb[0].mxu0
  %v894 = vpop.f32.mrb[0].mxu0
  %v895 = vadd.f32 %v144, %v894
  %v896 = vpop.f32.mrb[0].mxu0
  %897 = vmatprep.mubr.bf16.mxu0 0
  %898 = vmatmul.mubr.bf16.gmra.mrb[0].mxu0 %v519
  %v899 = vpop.f32.mrb[0].mxu0
  %v900 = vadd.f32 %v144, %v899
  %v901 = vpop.f32.mrb[0].mxu0
  %v902 = vpop.f32.mrb[0].mxu0
  %v903 = vadd.f32 %v144, %v902
  %v904 = vpop.f32.mrb[0].mxu0
  %905 = vmatprep.mubr.bf16.mxu0 0
  %906 = vmatmul.mubr.bf16.gmra.mrb[0].mxu0 %v522
  %v907 = vpop.f32.mrb[0].mxu0
  %v908 = vadd.f32 %v144, %v907
  %v909 = vpop.f32.mrb[0].mxu0
  %v910 = vpop.f32.mrb[0].mxu0
  %v911 = vadd.f32 %v144, %v910
  %v912 = vpop.f32.mrb[0].mxu0
  %913 = vmatprep.mubr.bf16.mxu0 0
  %914 = vmatmul.mubr.bf16.gmra.mrb[0].mxu0 %v525
  %v915 = vpop.f32.mrb[0].mxu0
  %v916 = vadd.f32 %v144, %v915
  %v917 = vpop.f32.mrb[0].mxu0
  %v918 = vpop.f32.mrb[0].mxu0
  %v919 = vadd.f32 %v144, %v918
  %v920 = vpop.f32.mrb[0].mxu0
  %921 = vmatprep.mubr.bf16.mxu0 0
  %922 = vmatmul.mubr.bf16.gmra.mrb[0].mxu0 %v528
  %v923 = vpop.f32.mrb[0].mxu0
  %v924 = vadd.f32 %v144, %v923
  %v925 = vpop.f32.mrb[0].mxu0
  %v926 = vpop.f32.mrb[0].mxu0
  %v927 = vadd.f32 %v144, %v926
  %v928 = vpop.f32.mrb[0].mxu0
  %929 = vmatprep.mubr.bf16.mxu0 0
  %930 = vmatmul.mubr.bf16.gmra.mrb[0].mxu0 %v531
  %v931 = vpop.f32.mrb[0].mxu0
  %v932 = vadd.f32 %v144, %v931
  %v933 = vpop.f32.mrb[0].mxu0
  %v934 = vpop.f32.mrb[0].mxu0
  %v935 = vadd.f32 %v144, %v934
  %v936 = vpop.f32.mrb[0].mxu0
  %937 = vmatprep.mubr.bf16.mxu0 0
  %938 = vmatmul.mubr.bf16.gmra.mrb[0].mxu0 %v534
  %v939 = vpop.f32.mrb[0].mxu0
  %v940 = vadd.f32 %v144, %v939
  %v941 = vpop.f32.mrb[0].mxu0
  %v942 = vpop.f32.mrb[0].mxu0
  %v943 = vadd.f32 %v144, %v942
  %v944 = vpop.f32.mrb[0].mxu0
  %945 = vmatprep.mubr.bf16.mxu0 0
  %946 = vmatmul.mubr.bf16.gmra.mrb[0].mxu0 %v537
  %v947 = vpop.f32.mrb[0].mxu0
  %v948 = vadd.f32 %v144, %v947
  %v949 = vpop.f32.mrb[0].mxu0
  %v950 = vpop.f32.mrb[0].mxu0
  %v951 = vadd.f32 %v144, %v950
  %v952 = vpop.f32.mrb[0].mxu0
  %953 = vmatprep.mubr.bf16.mxu0 0
  %954 = vmatmul.mubr.bf16.gmra.mrb[0].mxu0 %v540
  %v955 = vpop.f32.mrb[0].mxu0
  %v956 = vadd.f32 %v144, %v955
  %v957 = vpop.f32.mrb[0].mxu0
  %v958 = vpop.f32.mrb[0].mxu0
  %v959 = vadd.f32 %v144, %v958
  %v960 = vpop.f32.mrb[0].mxu0
  %961 = vmatprep.mubr.bf16.mxu0 0
  %962 = vmatmul.mubr.bf16.gmra.mrb[0].mxu0 %v543
  %v963 = vpop.f32.mrb[0].mxu0
  %v964 = vadd.f32 %v144, %v963
  %v965 = vpop.f32.mrb[0].mxu0
  %v966 = vpop.f32.mrb[0].mxu0
  %v967 = vadd.f32 %v144, %v966
  %v968 = vpop.f32.mrb[0].mxu0
  %969 = vdwg.mxu0
  %v970 = vmax.f32 %v580, 0.0
  %v971 = vmax.f32 %v583, 0.0
  %v972 = vmax.f32 %v588, 0.0
  %v973 = vmax.f32 %v591, 0.0
  %v974 = vmax.f32 %v596, 0.0
  %v975 = vmax.f32 %v599, 0.0
  %v976 = vmax.f32 %v604, 0.0
  %v977 = vmax.f32 %v607, 0.0
  %v978 = vmax.f32 %v612, 0.0
  %v979 = vmax.f32 %v615, 0.0
  %v980 = vmax.f32 %v620, 0.0
  %v981 = vmax.f32 %v623, 0.0
  %v982 = vmax.f32 %v628, 0.0
  %v983 = vmax.f32 %v631, 0.0
  %v984 = vmax.f32 %v636, 0.0
  %v985 = vmax.f32 %v639, 0.0
  %v986 = vmax.f32 %v644, 0.0
  %v987 = vmax.f32 %v647, 0.0
  %v988 = vmax.f32 %v652, 0.0
  %v989 = vmax.f32 %v655, 0.0
  %v990 = vmax.f32 %v660, 0.0
  %v991 = vmax.f32 %v663, 0.0
  %v992 = vmax.f32 %v668, 0.0
  %v993 = vmax.f32 %v671, 0.0
  %v994 = vmax.f32 %v676, 0.0
  %v995 = vmax.f32 %v679, 0.0
  %v996 = vmax.f32 %v684, 0.0
  %v997 = vmax.f32 %v687, 0.0
  %v998 = vmax.f32 %v692, 0.0
  %v999 = vmax.f32 %v695, 0.0
  %v1000 = vmax.f32 %v700, 0.0
  %v1001 = vmax.f32 %v703, 0.0
  %v1002 = vmax.f32 %v708, 0.0
  %v1003 = vmax.f32 %v711, 0.0
  %v1004 = vmax.f32 %v716, 0.0
  %v1005 = vmax.f32 %v719, 0.0
  %v1006 = vmax.f32 %v724, 0.0
  %v1007 = vmax.f32 %v727, 0.0
  %v1008 = vmax.f32 %v732, 0.0
  %v1009 = vmax.f32 %v735, 0.0
  %v1010 = vmax.f32 %v740, 0.0
  %v1011 = vmax.f32 %v743, 0.0
  %v1012 = vmax.f32 %v748, 0.0
  %v1013 = vmax.f32 %v751, 0.0
  %v1014 = vmax.f32 %v756, 0.0
  %v1015 = vmax.f32 %v759, 0.0
  %v1016 = vmax.f32 %v764, 0.0
  %v1017 = vmax.f32 %v767, 0.0
  %v1018 = vmax.f32 %v772, 0.0
  %v1019 = vmax.f32 %v775, 0.0
  %v1020 = vmax.f32 %v780, 0.0
  %v1021 = vmax.f32 %v783, 0.0
  %v1022 = vmax.f32 %v788, 0.0
  %v1023 = vmax.f32 %v791, 0.0
  %v1024 = vmax.f32 %v796, 0.0
  %v1025 = vmax.f32 %v799, 0.0
  %v1026 = vmax.f32 %v804, 0.0
  %v1027 = vmax.f32 %v807, 0.0
  %v1028 = vmax.f32 %v812, 0.0
  %v1029 = vmax.f32 %v815, 0.0
  %v1030 = vmax.f32 %v820, 0.0
  %v1031 = vmax.f32 %v823, 0.0
  %v1032 = vmax.f32 %v828, 0.0
  %v1033 = vmax.f32 %v831, 0.0
  %v1034 = vmax.f32 %v836, 0.0
  %v1035 = vmax.f32 %v839, 0.0
  %v1036 = vmax.f32 %v844, 0.0
  %v1037 = vmax.f32 %v847, 0.0
  %v1038 = vmax.f32 %v852, 0.0
  %v1039 = vmax.f32 %v855, 0.0
  %v1040 = vmax.f32 %v860, 0.0
  %v1041 = vmax.f32 %v863, 0.0
  %v1042 = vmax.f32 %v868, 0.0
  %v1043 = vmax.f32 %v871, 0.0
  %v1044 = vmax.f32 %v876, 0.0
  %v1045 = vmax.f32 %v879, 0.0
  %v1046 = vmax.f32 %v884, 0.0
  %v1047 = vmax.f32 %v887, 0.0
  %v1048 = vmax.f32 %v892, 0.0
  %v1049 = vmax.f32 %v895, 0.0
  %v1050 = vmax.f32 %v900, 0.0
  %v1051 = vmax.f32 %v903, 0.0
  %v1052 = vmax.f32 %v908, 0.0
  %v1053 = vmax.f32 %v911, 0.0
  %v1054 = vmax.f32 %v916, 0.0
  %v1055 = vmax.f32 %v919, 0.0
  %v1056 = vmax.f32 %v924, 0.0
  %v1057 = vmax.f32 %v927, 0.0
  %v1058 = vmax.f32 %v932, 0.0
  %v1059 = vmax.f32 %v935, 0.0
  %v1060 = vmax.f32 %v940, 0.0
  %v1061 = vmax.f32 %v943, 0.0
  %v1062 = vmax.f32 %v948, 0.0
  %v1063 = vmax.f32 %v951, 0.0
  %v1064 = vmax.f32 %v956, 0.0
  %v1065 = vmax.f32 %v959, 0.0
  %v1066 = vmax.f32 %v964, 0.0
  %v1067 = vmax.f32 %v967, 0.0
  %v1068 = vpack.c.bf16 %v971, %v970
  %v1069 = vpack.c.bf16 %v973, %v972
  %v1070 = vpack.c.bf16 %v975, %v974
  %v1071 = vpack.c.bf16 %v977, %v976
  %v1072 = vpack.c.bf16 %v979, %v978
  %v1073 = vpack.c.bf16 %v981, %v980
  %v1074 = vpack.c.bf16 %v983, %v982
  %v1075 = vpack.c.bf16 %v985, %v984
  %v1076 = vpack.c.bf16 %v987, %v986
  %v1077 = vpack.c.bf16 %v989, %v988
  %v1078 = vpack.c.bf16 %v991, %v990
  %v1079 = vpack.c.bf16 %v993, %v992
  %v1080 = vpack.c.bf16 %v995, %v994
  %v1081 = vpack.c.bf16 %v997, %v996
  %v1082 = vpack.c.bf16 %v999, %v998
  %v1083 = vpack.c.bf16 %v1001, %v1000
  %v1084 = vpack.c.bf16 %v1003, %v1002
  %v1085 = vpack.c.bf16 %v1005, %v1004
  %v1086 = vpack.c.bf16 %v1007, %v1006
  %v1087 = vpack.c.bf16 %v1009, %v1008
  %v1088 = vpack.c.bf16 %v1011, %v1010
  %v1089 = vpack.c.bf16 %v1013, %v1012
  %v1090 = vpack.c.bf16 %v1015, %v1014
  %v1091 = vpack.c.bf16 %v1017, %v1016
  %v1092 = vpack.c.bf16 %v1019, %v1018
  %v1093 = vpack.c.bf16 %v1021, %v1020
  %v1094 = vpack.c.bf16 %v1023, %v1022
  %v1095 = vpack.c.bf16 %v1025, %v1024
  %v1096 = vpack.c.bf16 %v1027, %v1026
  %v1097 = vpack.c.bf16 %v1029, %v1028
  %v1098 = vpack.c.bf16 %v1031, %v1030
  %v1099 = vpack.c.bf16 %v1033, %v1032
  %v1100 = vpack.c.bf16 %v1035, %v1034
  %v1101 = vpack.c.bf16 %v1037, %v1036
  %v1102 = vpack.c.bf16 %v1039, %v1038
  %v1103 = vpack.c.bf16 %v1041, %v1040
  %v1104 = vpack.c.bf16 %v1043, %v1042
  %v1105 = vpack.c.bf16 %v1045, %v1044
  %v1106 = vpack.c.bf16 %v1047, %v1046
  %v1107 = vpack.c.bf16 %v1049, %v1048
  %v1108 = vpack.c.bf16 %v1051, %v1050
  %v1109 = vpack.c.bf16 %v1053, %v1052
  %v1110 = vpack.c.bf16 %v1055, %v1054
  %v1111 = vpack.c.bf16 %v1057, %v1056
  %v1112 = vpack.c.bf16 %v1059, %v1058
  %v1113 = vpack.c.bf16 %v1061, %v1060
  %v1114 = vpack.c.bf16 %v1063, %v1062
  %v1115 = vpack.c.bf16 %v1065, %v1064
  %v1116 = vpack.c.bf16 %v1067, %v1066
  %1118 = vrot.lane.b32.xlu0 %v1069, 32
  %v1119 = vpop.permute.xlu0 %1118
  %1121 = vrot.lane.b32.xlu0 %v1070, 64
  %v1122 = vpop.permute.xlu0 %1121
  %1124 = vrot.lane.b32.xlu0 %v1075, 96
  %v1125 = vpop.permute.xlu0 %1124
  %1127 = vrot.lane.b32.xlu0 %v1077, 32
  %v1128 = vpop.permute.xlu0 %1127
  %1130 = vrot.lane.b32.xlu0 %v1082, 64
  %v1131 = vpop.permute.xlu0 %1130
  %1133 = vrot.lane.b32.xlu0 %v1083, 96
  %v1134 = vpop.permute.xlu0 %1133
  %vm1135 = vcmask 261120
  %v1138 = vsel %vm1135, %v1068, %v1119
  %vm1139 = vcmask 523264
  %v1141 = vsel %vm1139, %v1138, %v1122
  %vm1142 = vcmask 785408
  %v1144 = vsel %vm1142, %v1141, %v1125
  %v1148 = vsel %vm1135, %v1076, %v1128
  %v1150 = vsel %vm1139, %v1148, %v1131
  %v1152 = vsel %vm1142, %v1150, %v1134
  %1155 = vrot.lane.b32.xlu0 %v1071, 32
  %v1156 = vpop.permute.xlu0 %1155
  %1158 = vrot.lane.b32.xlu0 %v1072, 64
  %v1159 = vpop.permute.xlu0 %1158
  %1160 = vrot.lane.b32.xlu0 %v1077, 96
  %v1161 = vpop.permute.xlu0 %1160
  %1163 = vrot.lane.b32.xlu0 %v1079, 32
  %v1164 = vpop.permute.xlu0 %1163
  %1166 = vrot.lane.b32.xlu0 %v1084, 64
  %v1167 = vpop.permute.xlu0 %1166
  %1169 = vrot.lane.b32.xlu0 %v1085, 96
  %v1170 = vpop.permute.xlu0 %1169
  %v1173 = vsel %vm1135, %v1070, %v1156
  %v1175 = vsel %vm1139, %v1173, %v1159
  %v1177 = vsel %vm1142, %v1175, %v1161
  %v1181 = vsel %vm1135, %v1078, %v1164
  %v1183 = vsel %vm1139, %v1181, %v1167
  %v1185 = vsel %vm1142, %v1183, %v1170
  %1188 = vrot.lane.b32.xlu0 %v1073, 32
  %v1189 = vpop.permute.xlu0 %1188
  %1191 = vrot.lane.b32.xlu0 %v1074, 64
  %v1192 = vpop.permute.xlu0 %1191
  %1193 = vrot.lane.b32.xlu0 %v1079, 96
  %v1194 = vpop.permute.xlu0 %1193
  %1196 = vrot.lane.b32.xlu0 %v1081, 32
  %v1197 = vpop.permute.xlu0 %1196
  %1199 = vrot.lane.b32.xlu0 %v1086, 64
  %v1200 = vpop.permute.xlu0 %1199
  %1202 = vrot.lane.b32.xlu0 %v1087, 96
  %v1203 = vpop.permute.xlu0 %1202
  %v1206 = vsel %vm1135, %v1072, %v1189
  %v1208 = vsel %vm1139, %v1206, %v1192
  %v1210 = vsel %vm1142, %v1208, %v1194
  %v1214 = vsel %vm1135, %v1080, %v1197
  %v1216 = vsel %vm1139, %v1214, %v1200
  %v1218 = vsel %vm1142, %v1216, %v1203
  %1220 = vrot.lane.b32.xlu0 %v1083, 32
  %v1221 = vpop.permute.xlu0 %1220
  %1223 = vrot.lane.b32.xlu0 %v1089, 96
  %v1224 = vpop.permute.xlu0 %1223
  %1226 = vrot.lane.b32.xlu0 %v1091, 32
  %v1227 = vpop.permute.xlu0 %1226
  %1229 = vrot.lane.b32.xlu0 %v1096, 64
  %v1230 = vpop.permute.xlu0 %1229
  %1232 = vrot.lane.b32.xlu0 %v1097, 96
  %v1233 = vpop.permute.xlu0 %1232
  %v1236 = vsel %vm1135, %v1082, %v1221
  %v1237 = vsel %vm1139, %v1236, %v1167
  %v1239 = vsel %vm1142, %v1237, %v1224
  %v1243 = vsel %vm1135, %v1090, %v1227
  %v1245 = vsel %vm1139, %v1243, %v1230
  %v1247 = vsel %vm1142, %v1245, %v1233
  %1249 = vrot.lane.b32.xlu0 %v1085, 32
  %v1250 = vpop.permute.xlu0 %1249
  %1251 = vrot.lane.b32.xlu0 %v1091, 96
  %v1252 = vpop.permute.xlu0 %1251
  %1254 = vrot.lane.b32.xlu0 %v1093, 32
  %v1255 = vpop.permute.xlu0 %1254
  %1257 = vrot.lane.b32.xlu0 %v1098, 64
  %v1258 = vpop.permute.xlu0 %1257
  %1260 = vrot.lane.b32.xlu0 %v1099, 96
  %v1261 = vpop.permute.xlu0 %1260
  %v1264 = vsel %vm1135, %v1084, %v1250
  %v1265 = vsel %vm1139, %v1264, %v1200
  %v1267 = vsel %vm1142, %v1265, %v1252
  %v1271 = vsel %vm1135, %v1092, %v1255
  %v1273 = vsel %vm1139, %v1271, %v1258
  %v1275 = vsel %vm1142, %v1273, %v1261
  %1277 = vrot.lane.b32.xlu0 %v1087, 32
  %v1278 = vpop.permute.xlu0 %1277
  %1280 = vrot.lane.b32.xlu0 %v1088, 64
  %v1281 = vpop.permute.xlu0 %1280
  %1282 = vrot.lane.b32.xlu0 %v1093, 96
  %v1283 = vpop.permute.xlu0 %1282
  %1285 = vrot.lane.b32.xlu0 %v1095, 32
  %v1286 = vpop.permute.xlu0 %1285
  %1288 = vrot.lane.b32.xlu0 %v1100, 64
  %v1289 = vpop.permute.xlu0 %1288
  %1291 = vrot.lane.b32.xlu0 %v1101, 96
  %v1292 = vpop.permute.xlu0 %1291
  %v1295 = vsel %vm1135, %v1086, %v1278
  %v1297 = vsel %vm1139, %v1295, %v1281
  %v1299 = vsel %vm1142, %v1297, %v1283
  %v1303 = vsel %vm1135, %v1094, %v1286
  %v1305 = vsel %vm1139, %v1303, %v1289
  %v1307 = vsel %vm1142, %v1305, %v1292
  %1309 = vrot.lane.b32.xlu0 %v1097, 32
  %v1310 = vpop.permute.xlu0 %1309
  %1312 = vrot.lane.b32.xlu0 %v1103, 96
  %v1313 = vpop.permute.xlu0 %1312
  %1315 = vrot.lane.b32.xlu0 %v1105, 32
  %v1316 = vpop.permute.xlu0 %1315
  %1318 = vrot.lane.b32.xlu0 %v1110, 64
  %v1319 = vpop.permute.xlu0 %1318
  %1321 = vrot.lane.b32.xlu0 %v1111, 96
  %v1322 = vpop.permute.xlu0 %1321
  %v1325 = vsel %vm1135, %v1096, %v1310
  %v1326 = vsel %vm1139, %v1325, %v1258
  %v1328 = vsel %vm1142, %v1326, %v1313
  %v1332 = vsel %vm1135, %v1104, %v1316
  %v1334 = vsel %vm1139, %v1332, %v1319
  %v1336 = vsel %vm1142, %v1334, %v1322
  %1338 = vrot.lane.b32.xlu0 %v1099, 32
  %v1339 = vpop.permute.xlu0 %1338
  %1340 = vrot.lane.b32.xlu0 %v1105, 96
  %v1341 = vpop.permute.xlu0 %1340
  %1343 = vrot.lane.b32.xlu0 %v1107, 32
  %v1344 = vpop.permute.xlu0 %1343
  %1346 = vrot.lane.b32.xlu0 %v1112, 64
  %v1347 = vpop.permute.xlu0 %1346
  %1349 = vrot.lane.b32.xlu0 %v1113, 96
  %v1350 = vpop.permute.xlu0 %1349
  %v1353 = vsel %vm1135, %v1098, %v1339
  %v1354 = vsel %vm1139, %v1353, %v1289
  %v1356 = vsel %vm1142, %v1354, %v1341
  %v1360 = vsel %vm1135, %v1106, %v1344
  %v1362 = vsel %vm1139, %v1360, %v1347
  %v1364 = vsel %vm1142, %v1362, %v1350
  %1366 = vrot.lane.b32.xlu0 %v1101, 32
  %v1367 = vpop.permute.xlu0 %1366
  %1369 = vrot.lane.b32.xlu0 %v1102, 64
  %v1370 = vpop.permute.xlu0 %1369
  %1371 = vrot.lane.b32.xlu0 %v1107, 96
  %v1372 = vpop.permute.xlu0 %1371
  %1374 = vrot.lane.b32.xlu0 %v1109, 32
  %v1375 = vpop.permute.xlu0 %1374
  %1377 = vrot.lane.b32.xlu0 %v1114, 64
  %v1378 = vpop.permute.xlu0 %1377
  %1380 = vrot.lane.b32.xlu0 %v1115, 96
  %v1381 = vpop.permute.xlu0 %1380
  %v1384 = vsel %vm1135, %v1100, %v1367
  %v1386 = vsel %vm1139, %v1384, %v1370
  %v1388 = vsel %vm1142, %v1386, %v1372
  %v1392 = vsel %vm1135, %v1108, %v1375
  %v1394 = vsel %vm1139, %v1392, %v1378
  %v1396 = vsel %vm1142, %v1394, %v1381
  %v1398 = vld [vmem:[%s3] sm:$0xf]
  %v1399 = vld [vmem:[%s3 + $0x4] sm:$0xf]
  %v1400 = vld [vmem:[%s3 + $0x8] sm:$0xf]
  %v1401 = vld [vmem:[%s3 + $0xc] sm:$0xf]
  %v1402 = vld [vmem:[%s3 + $0x10] sm:$0xf]
  %v1403 = vld [vmem:[%s3 + $0x14] sm:$0xf]
  %v1404 = vld [vmem:[%s3 + $0x18] sm:$0xf]
  %v1405 = vld [vmem:[%s3 + $0x1c] sm:$0xf]
  %v1406 = vld [vmem:[%s3 + $0x20] sm:$0xf]
  %v1407 = vld [vmem:[%s3 + $0x24] sm:$0xf]
  %v1408 = vld [vmem:[%s3 + $0x28] sm:$0xf]
  %v1409 = vld [vmem:[%s3 + $0x2c] sm:$0xf]
  %v1410 = vld [vmem:[%s3 + $0x30] sm:$0xf]
  %v1411 = vld [vmem:[%s3 + $0x34] sm:$0xf]
  %v1412 = vld [vmem:[%s3 + $0x38] sm:$0xf]
  %v1413 = vld [vmem:[%s3 + $0x3c] sm:$0xf]
  %v1414 = vld [vmem:[%s3 + $0x40] sm:$0xf]
  %v1415 = vld [vmem:[%s3 + $0x44] sm:$0xf]
  %v1416 = vld [vmem:[%s3 + $0x48] sm:$0xf]
  %v1417 = vld [vmem:[%s3 + $0x4c] sm:$0xf]
  %v1418 = vld [vmem:[%s3 + $0x50] sm:$0xf]
  %v1419 = vld [vmem:[%s3 + $0x54] sm:$0xf]
  %v1420 = vld [vmem:[%s3 + $0x58] sm:$0xf]
  %v1421 = vld [vmem:[%s3 + $0x5c] sm:$0xf]
  %v1422 = vld [vmem:[%s3 + $0x60] sm:$0xf]
  %v1423 = vld [vmem:[%s3 + $0x64] sm:$0xf]
  %v1424 = vld [vmem:[%s3 + $0x68] sm:$0xf]
  %v1425 = vld [vmem:[%s3 + $0x6c] sm:$0xf]
  %v1426 = vld [vmem:[%s3 + $0x70] sm:$0xf]
  %v1427 = vld [vmem:[%s3 + $0x74] sm:$0xf]
  %v1428 = vld [vmem:[%s3 + $0x78] sm:$0xf]
  %v1429 = vld [vmem:[%s3 + $0x7c] sm:$0xf]
  %v1430 = vld [vmem:[%s3 + $0x80] sm:$0xf]
  %v1431 = vld [vmem:[%s3 + $0x84] sm:$0xf]
  %v1432 = vld [vmem:[%s3 + $0x88] sm:$0xf]
  %v1433 = vld [vmem:[%s3 + $0x8c] sm:$0xf]
  %v1434 = vld [vmem:[%s4] sm:$0x1]
  %v1436 = vlaneseq
  %v1437 = vshrl.u32 %v1436, 7
  %v1438 = vsub.s32 0, %v1437
  %v1439 = vrot.slane %v1434, %v1438
  %v1477 = vunpack.c.l.b16 %v1398
  %v1478 = vunpack.c.l.b16 %v1399
  %v1479 = vunpack.c.l.b16 %v1400
  %v1480 = vunpack.c.l.b16 %v1401
  %v1481 = vunpack.c.l.b16 %v1402
  %v1482 = vunpack.c.l.b16 %v1403
  %v1483 = vunpack.c.l.b16 %v1404
  %v1484 = vunpack.c.l.b16 %v1405
  %v1485 = vunpack.c.l.b16 %v1406
  %v1486 = vunpack.c.l.b16 %v1407
  %v1487 = vunpack.c.l.b16 %v1408
  %v1488 = vunpack.c.l.b16 %v1409
  %v1489 = vunpack.c.l.b16 %v1410
  %v1490 = vunpack.c.l.b16 %v1411
  %v1491 = vunpack.c.l.b16 %v1412
  %v1492 = vunpack.c.l.b16 %v1413
  %v1493 = vunpack.c.l.b16 %v1414
  %v1494 = vunpack.c.l.b16 %v1415
  %v1495 = vunpack.c.l.b16 %v1416
  %v1496 = vunpack.c.l.b16 %v1417
  %v1497 = vunpack.c.l.b16 %v1418
  %v1498 = vunpack.c.l.b16 %v1419
  %v1499 = vunpack.c.l.b16 %v1420
  %v1500 = vunpack.c.l.b16 %v1421
  %v1501 = vunpack.c.l.b16 %v1422
  %v1502 = vunpack.c.l.b16 %v1423
  %v1503 = vunpack.c.l.b16 %v1424
  %v1504 = vunpack.c.l.b16 %v1425
  %v1505 = vunpack.c.l.b16 %v1426
  %v1506 = vunpack.c.l.b16 %v1427
  %v1507 = vunpack.c.l.b16 %v1428
  %v1508 = vunpack.c.l.b16 %v1429
  %v1509 = vunpack.c.l.b16 %v1430
  %v1510 = vunpack.c.l.b16 %v1431
  %v1511 = vunpack.c.l.b16 %v1432
  %v1512 = vunpack.c.l.b16 %v1433
  %v1513 = vpack.c.b16 %v1478, %v1477
  %v1514 = vpack.c.b16 %v1480, %v1479
  %v1515 = vpack.c.b16 %v1482, %v1481
  %v1516 = vpack.c.b16 %v1484, %v1483
  %v1517 = vpack.c.b16 %v1486, %v1485
  %v1518 = vpack.c.b16 %v1488, %v1487
  %v1519 = vpack.c.b16 %v1490, %v1489
  %v1520 = vpack.c.b16 %v1492, %v1491
  %v1521 = vpack.c.b16 %v1494, %v1493
  %v1522 = vpack.c.b16 %v1496, %v1495
  %v1523 = vpack.c.b16 %v1498, %v1497
  %v1524 = vpack.c.b16 %v1500, %v1499
  %v1525 = vpack.c.b16 %v1502, %v1501
  %v1526 = vpack.c.b16 %v1504, %v1503
  %v1527 = vpack.c.b16 %v1506, %v1505
  %v1528 = vpack.c.b16 %v1508, %v1507
  %v1529 = vpack.c.b16 %v1510, %v1509
  %v1530 = vpack.c.b16 %v1512, %v1511
  %v1549 = vsel %vm1135, %v1084, 0
  %v1551 = vsel %vm1135, %v1086, 0
  %v1554 = vsel %vm1135, %v1088, 0
  %v1556 = vsel %vm1135, %v1098, 0
  %v1558 = vsel %vm1135, %v1100, 0
  %v1561 = vsel %vm1135, %v1102, 0
  %v1564 = vsel %vm1135, %v1112, 0
  %v1567 = vsel %vm1135, %v1114, 0
  %v1570 = vsel %vm1135, %v1116, 0
  %1572 = vmatprep.subr.bf16.mxu0 0
  %1573 = vmatpush1.bf16.msra.mxu0 %v1513
  %1574 = vmatprep.subr.bf16.mxu0 0
  %1575 = vmatpush1.bf16.msra.mxu0 %v1514
  %1576 = vmatprep.subr.bf16.mxu0 0
  %1577 = vmatpush1.bf16.msra.mxu0 %v1515
  %1578 = vmatprep.subr.bf16.mxu0 0
  %1579 = vmatpush1.bf16.msra.mxu0 %v1516
  %1580 = vmatprep.subr.bf16.mxu0 0
  %1581 = vmatpush1.bf16.msra.mxu0 %v1517
  %1582 = vmatprep.subr.bf16.mxu0 0
  %1583 = vmatpush1.bf16.msra.mxu0 %v1518
  %1584 = vmatprep.subr.bf16.mxu0 0
  %1585 = vmatpush1.bf16.msra.mxu0 %v1519
  %1586 = vmatprep.subr.bf16.mxu0 0
  %1587 = vmatpush1.bf16.msra.mxu0 %v1520
  %1588 = vmatprep.subr.bf16.mxu0 0
  %1589 = vmatpush1.bf16.msra.mxu0 %v1521
  %1590 = vmatprep.subr.bf16.mxu0 0
  %1591 = vmatpush1.bf16.msra.mxu0 %v1522
  %1592 = vmatprep.subr.bf16.mxu0 0
  %1593 = vmatpush1.bf16.msra.mxu0 %v1523
  %1594 = vmatprep.subr.bf16.mxu0 0
  %1595 = vmatpush1.bf16.msra.mxu0 %v1524
  %1596 = vmatprep.subr.bf16.mxu0 0
  %1597 = vmatpush1.bf16.msra.mxu0 %v1525
  %1598 = vmatprep.subr.bf16.mxu0 0
  %1599 = vmatpush1.bf16.msra.mxu0 %v1526
  %1600 = vmatprep.subr.bf16.mxu0 0
  %1601 = vmatpush1.bf16.msra.mxu0 %v1527
  %1602 = vmatprep.subr.bf16.mxu0 0
  %1603 = vmatpush1.bf16.msra.mxu0 %v1528
  %1604 = vmatprep.mubr.bf16.mxu0 %v1152
  %1605 = vmatmul.mubr.bf16.gmra.mrb[0].mxu0 %v1144
  %v1606 = vpop.f32.mrb[0].mxu0
  %v1607 = vadd.f32 %v1439, %v1606
  %v1608 = vpop.f32.mrb[0].mxu0
  %v1609 = vpop.f32.mrb[0].mxu0
  %v1610 = vadd.f32 %v1439, %v1609
  %v1611 = vpop.f32.mrb[0].mxu0
  %1612 = vmatprep.mubr.bf16.mxu0 %v1185
  %1613 = vmatmul.mubr.bf16.gmra.mrb[0].mxu0 %v1177
  %v1614 = vpop.f32.mrb[0].mxu0
  %v1615 = vadd.f32 %v1439, %v1614
  %v1616 = vpop.f32.mrb[0].mxu0
  %v1617 = vpop.f32.mrb[0].mxu0
  %v1618 = vadd.f32 %v1439, %v1617
  %v1619 = vpop.f32.mrb[0].mxu0
  %1620 = vmatprep.mubr.bf16.mxu0 %v1218
  %1621 = vmatmul.mubr.bf16.gmra.mrb[0].mxu0 %v1210
  %v1622 = vpop.f32.mrb[0].mxu0
  %v1623 = vadd.f32 %v1439, %v1622
  %v1624 = vpop.f32.mrb[0].mxu0
  %v1625 = vpop.f32.mrb[0].mxu0
  %v1626 = vadd.f32 %v1439, %v1625
  %v1627 = vpop.f32.mrb[0].mxu0
  %1628 = vmatprep.mubr.bf16.mxu0 %v1247
  %1629 = vmatmul.mubr.bf16.gmra.mrb[0].mxu0 %v1239
  %v1630 = vpop.f32.mrb[0].mxu0
  %v1631 = vadd.f32 %v1439, %v1630
  %v1632 = vpop.f32.mrb[0].mxu0
  %v1633 = vpop.f32.mrb[0].mxu0
  %v1634 = vadd.f32 %v1439, %v1633
  %v1635 = vpop.f32.mrb[0].mxu0
  %1636 = vmatprep.mubr.bf16.mxu0 %v1275
  %1637 = vmatmul.mubr.bf16.gmra.mrb[0].mxu0 %v1267
  %v1638 = vpop.f32.mrb[0].mxu0
  %v1639 = vadd.f32 %v1439, %v1638
  %v1640 = vpop.f32.mrb[0].mxu0
  %v1641 = vpop.f32.mrb[0].mxu0
  %v1642 = vadd.f32 %v1439, %v1641
  %v1643 = vpop.f32.mrb[0].mxu0
  %1644 = vmatprep.mubr.bf16.mxu0 %v1307
  %1645 = vmatmul.mubr.bf16.gmra.mrb[0].mxu0 %v1299
  %v1646 = vpop.f32.mrb[0].mxu0
  %v1647 = vadd.f32 %v1439, %v1646
  %v1648 = vpop.f32.mrb[0].mxu0
  %v1649 = vpop.f32.mrb[0].mxu0
  %v1650 = vadd.f32 %v1439, %v1649
  %v1651 = vpop.f32.mrb[0].mxu0
  %1652 = vmatprep.mubr.bf16.mxu0 %v1336
  %1653 = vmatmul.mubr.bf16.gmra.mrb[0].mxu0 %v1328
  %v1654 = vpop.f32.mrb[0].mxu0
  %v1655 = vadd.f32 %v1439, %v1654
  %v1656 = vpop.f32.mrb[0].mxu0
  %v1657 = vpop.f32.mrb[0].mxu0
  %v1658 = vadd.f32 %v1439, %v1657
  %v1659 = vpop.f32.mrb[0].mxu0
  %1660 = vmatprep.mubr.bf16.mxu0 %v1364
  %1661 = vmatmul.mubr.bf16.gmra.mrb[0].mxu0 %v1356
  %v1662 = vpop.f32.mrb[0].mxu0
  %v1663 = vadd.f32 %v1439, %v1662
  %v1664 = vpop.f32.mrb[0].mxu0
  %v1665 = vpop.f32.mrb[0].mxu0
  %v1666 = vadd.f32 %v1439, %v1665
  %v1667 = vpop.f32.mrb[0].mxu0
  %1668 = vmatprep.mubr.bf16.mxu0 %v1396
  %1669 = vmatmul.mubr.bf16.gmra.mrb[0].mxu0 %v1388
  %v1670 = vpop.f32.mrb[0].mxu0
  %v1671 = vadd.f32 %v1439, %v1670
  %v1672 = vpop.f32.mrb[0].mxu0
  %v1673 = vpop.f32.mrb[0].mxu0
  %v1674 = vadd.f32 %v1439, %v1673
  %v1675 = vpop.f32.mrb[0].mxu0
  %1676 = vdwg.mxu0
  %1677 = vmatprep.subr.bf16.mxu0 0
  %1678 = vmatpush1.bf16.msra.mxu0 %v1529
  %1679 = vmatprep.subr.bf16.mxu0 0
  %1680 = vmatpush1.bf16.msra.mxu0 %v1530
  %1681 = vmatprep.subr.bf16.mxu0 0
  %1682 = vmatpush1.bf16.msra.mxu0 0
  %1683 = vmatprep.subr.bf16.mxu0 0
  %1684 = vmatpush1.bf16.msra.mxu0 0
  %1685 = vmatprep.subr.bf16.mxu0 0
  %1686 = vmatpush1.bf16.msra.mxu0 0
  %1687 = vmatprep.subr.bf16.mxu0 0
  %1688 = vmatpush1.bf16.msra.mxu0 0
  %1689 = vmatprep.subr.bf16.mxu0 0
  %1690 = vmatpush1.bf16.msra.mxu0 0
  %1691 = vmatprep.subr.bf16.mxu0 0
  %1692 = vmatpush1.bf16.msra.mxu0 0
  %1693 = vmatprep.subr.bf16.mxu0 0
  %1694 = vmatpush1.bf16.msra.mxu0 0
  %1695 = vmatprep.subr.bf16.mxu0 0
  %1696 = vmatpush1.bf16.msra.mxu0 0
  %1697 = vmatprep.subr.bf16.mxu0 0
  %1698 = vmatpush1.bf16.msra.mxu0 0
  %1699 = vmatprep.subr.bf16.mxu0 0
  %1700 = vmatpush1.bf16.msra.mxu0 0
  %1701 = vmatprep.subr.bf16.mxu0 0
  %1702 = vmatpush1.bf16.msra.mxu0 0
  %1703 = vmatprep.subr.bf16.mxu0 0
  %1704 = vmatpush1.bf16.msra.mxu0 0
  %1705 = vmatprep.subr.bf16.mxu0 0
  %1706 = vmatpush1.bf16.msra.mxu0 0
  %1707 = vmatprep.subr.bf16.mxu0 0
  %1708 = vmatpush1.bf16.msra.mxu0 0
  %1709 = vmatprep.mubr.bf16.mxu0 0
  %1710 = vmatmul.mubr.bf16.gmra.mrb[0].mxu0 %v1549
  %v1711 = vpop.f32.mrb[0].mxu0
  %v1712 = vadd.f32 %v1607, %v1711
  %v1713 = vpop.f32.mrb[0].mxu0
  %v1714 = vpop.f32.mrb[0].mxu0
  %v1715 = vadd.f32 %v1610, %v1714
  %v1716 = vpop.f32.mrb[0].mxu0
  %1717 = vmatprep.mubr.bf16.mxu0 0
  %1718 = vmatmul.mubr.bf16.gmra.mrb[0].mxu0 %v1551
  %v1719 = vpop.f32.mrb[0].mxu0
  %v1720 = vadd.f32 %v1615, %v1719
  %v1721 = vpop.f32.mrb[0].mxu0
  %v1722 = vpop.f32.mrb[0].mxu0
  %v1723 = vadd.f32 %v1618, %v1722
  %v1724 = vpop.f32.mrb[0].mxu0
  %1725 = vmatprep.mubr.bf16.mxu0 0
  %1726 = vmatmul.mubr.bf16.gmra.mrb[0].mxu0 %v1554
  %v1727 = vpop.f32.mrb[0].mxu0
  %v1728 = vadd.f32 %v1623, %v1727
  %v1729 = vpop.f32.mrb[0].mxu0
  %v1730 = vpop.f32.mrb[0].mxu0
  %v1731 = vadd.f32 %v1626, %v1730
  %v1732 = vpop.f32.mrb[0].mxu0
  %1733 = vmatprep.mubr.bf16.mxu0 0
  %1734 = vmatmul.mubr.bf16.gmra.mrb[0].mxu0 %v1556
  %v1735 = vpop.f32.mrb[0].mxu0
  %v1736 = vadd.f32 %v1631, %v1735
  %v1737 = vpop.f32.mrb[0].mxu0
  %v1738 = vpop.f32.mrb[0].mxu0
  %v1739 = vadd.f32 %v1634, %v1738
  %v1740 = vpop.f32.mrb[0].mxu0
  %1741 = vmatprep.mubr.bf16.mxu0 0
  %1742 = vmatmul.mubr.bf16.gmra.mrb[0].mxu0 %v1558
  %v1743 = vpop.f32.mrb[0].mxu0
  %v1744 = vadd.f32 %v1639, %v1743
  %v1745 = vpop.f32.mrb[0].mxu0
  %v1746 = vpop.f32.mrb[0].mxu0
  %v1747 = vadd.f32 %v1642, %v1746
  %v1748 = vpop.f32.mrb[0].mxu0
  %1749 = vmatprep.mubr.bf16.mxu0 0
  %1750 = vmatmul.mubr.bf16.gmra.mrb[0].mxu0 %v1561
  %v1751 = vpop.f32.mrb[0].mxu0
  %v1752 = vadd.f32 %v1647, %v1751
  %v1753 = vpop.f32.mrb[0].mxu0
  %v1754 = vpop.f32.mrb[0].mxu0
  %v1755 = vadd.f32 %v1650, %v1754
  %v1756 = vpop.f32.mrb[0].mxu0
  %1757 = vmatprep.mubr.bf16.mxu0 0
  %1758 = vmatmul.mubr.bf16.gmra.mrb[0].mxu0 %v1564
  %v1759 = vpop.f32.mrb[0].mxu0
  %v1760 = vadd.f32 %v1655, %v1759
  %v1761 = vpop.f32.mrb[0].mxu0
  %v1762 = vpop.f32.mrb[0].mxu0
  %v1763 = vadd.f32 %v1658, %v1762
  %v1764 = vpop.f32.mrb[0].mxu0
  %1765 = vmatprep.mubr.bf16.mxu0 0
  %1766 = vmatmul.mubr.bf16.gmra.mrb[0].mxu0 %v1567
  %v1767 = vpop.f32.mrb[0].mxu0
  %v1768 = vadd.f32 %v1663, %v1767
  %v1769 = vpop.f32.mrb[0].mxu0
  %v1770 = vpop.f32.mrb[0].mxu0
  %v1771 = vadd.f32 %v1666, %v1770
  %v1772 = vpop.f32.mrb[0].mxu0
  %1773 = vmatprep.mubr.bf16.mxu0 0
  %1774 = vmatmul.mubr.bf16.gmra.mrb[0].mxu0 %v1570
  %v1775 = vpop.f32.mrb[0].mxu0
  %v1776 = vadd.f32 %v1671, %v1775
  %v1777 = vpop.f32.mrb[0].mxu0
  %v1778 = vpop.f32.mrb[0].mxu0
  %v1779 = vadd.f32 %v1674, %v1778
  %v1780 = vpop.f32.mrb[0].mxu0
  %1781 = vdwg.mxu0
  %v1782 = vmax.f32 %v1712, 0.0
  %v1783 = vmax.f32 %v1715, 0.0
  %v1784 = vmax.f32 %v1720, 0.0
  %v1785 = vmax.f32 %v1723, 0.0
  %v1786 = vmax.f32 %v1728, 0.0
  %v1787 = vmax.f32 %v1731, 0.0
  %v1788 = vmax.f32 %v1736, 0.0
  %v1789 = vmax.f32 %v1739, 0.0
  %v1790 = vmax.f32 %v1744, 0.0
  %v1791 = vmax.f32 %v1747, 0.0
  %v1792 = vmax.f32 %v1752, 0.0
  %v1793 = vmax.f32 %v1755, 0.0
  %v1794 = vmax.f32 %v1760, 0.0
  %v1795 = vmax.f32 %v1763, 0.0
  %v1796 = vmax.f32 %v1768, 0.0
  %v1797 = vmax.f32 %v1771, 0.0
  %v1798 = vmax.f32 %v1776, 0.0
  %v1799 = vmax.f32 %v1779, 0.0
  %v1800 = vpack.c.bf16 %v1783, %v1782
  %v1801 = vpack.c.bf16 %v1785, %v1784
  %v1802 = vpack.c.bf16 %v1787, %v1786
  %v1803 = vpack.c.bf16 %v1789, %v1788
  %v1804 = vpack.c.bf16 %v1791, %v1790
  %v1805 = vpack.c.bf16 %v1793, %v1792
  %v1806 = vpack.c.bf16 %v1795, %v1794
  %v1807 = vpack.c.bf16 %v1797, %v1796
  %v1808 = vpack.c.bf16 %v1799, %v1798
  %1810 = vrot.lane.b32.xlu0 %v1801, 64
  %v1811 = vpop.permute.xlu0 %1810
  %1813 = vrot.lane.b32.xlu0 %v1803, 64
  %v1814 = vpop.permute.xlu0 %1813
  %1816 = vrot.lane.b32.xlu0 %v1805, 64
  %v1817 = vpop.permute.xlu0 %1816
  %1819 = vrot.lane.b32.xlu0 %v1807, 64
  %v1820 = vpop.permute.xlu0 %1819
  %v1823 = vsel %vm1139, %v1800, %v1811
  %v1827 = vsel %vm1139, %v1802, %v1814
  %v1831 = vsel %vm1139, %v1804, %v1817
  %v1835 = vsel %vm1139, %v1806, %v1820
  %v1837 = vld [vmem:[%s5] sm:$0xf]
  %v1838 = vld [vmem:[%s5 + $0x4] sm:$0xf]
  %v1839 = vld [vmem:[%s5 + $0x8] sm:$0xf]
  %v1840 = vld [vmem:[%s5 + $0xc] sm:$0xf]
  %v1841 = vld [vmem:[%s5 + $0x10] sm:$0xf]
  %v1842 = vld [vmem:[%s5 + $0x14] sm:$0xf]
  %v1843 = vld [vmem:[%s5 + $0x18] sm:$0xf]
  %v1844 = vld [vmem:[%s5 + $0x1c] sm:$0xf]
  %v1845 = vld [vmem:[%s5 + $0x20] sm:$0xf]
  %v1846 = vld [vmem:[%s5 + $0x24] sm:$0xf]
  %v1847 = vld [vmem:[%s5 + $0x28] sm:$0xf]
  %v1848 = vld [vmem:[%s5 + $0x2c] sm:$0xf]
  %v1849 = vld [vmem:[%s5 + $0x30] sm:$0xf]
  %v1850 = vld [vmem:[%s5 + $0x34] sm:$0xf]
  %v1851 = vld [vmem:[%s5 + $0x38] sm:$0xf]
  %v1852 = vld [vmem:[%s5 + $0x3c] sm:$0xf]
  %v1853 = vld [vmem:[%s5 + $0x40] sm:$0xf]
  %v1854 = vld [vmem:[%s5 + $0x44] sm:$0xf]
  %v1855 = vld [vmem:[%s5 + $0x48] sm:$0xf]
  %v1856 = vld [vmem:[%s5 + $0x4c] sm:$0xf]
  %v1857 = vld [vmem:[%s5 + $0x50] sm:$0xf]
  %v1858 = vld [vmem:[%s5 + $0x54] sm:$0xf]
  %v1859 = vld [vmem:[%s5 + $0x58] sm:$0xf]
  %v1860 = vld [vmem:[%s5 + $0x5c] sm:$0xf]
  %v1861 = vld [vmem:[%s5 + $0x60] sm:$0xf]
  %v1862 = vld [vmem:[%s5 + $0x64] sm:$0xf]
  %v1863 = vld [vmem:[%s5 + $0x68] sm:$0xf]
  %v1864 = vld [vmem:[%s5 + $0x6c] sm:$0xf]
  %v1865 = vld [vmem:[%s5 + $0x70] sm:$0xf]
  %v1866 = vld [vmem:[%s5 + $0x74] sm:$0xf]
  %v1867 = vld [vmem:[%s5 + $0x78] sm:$0xf]
  %v1868 = vld [vmem:[%s5 + $0x7c] sm:$0xf]
  %v1869 = vld [vmem:[%s5 + $0x80] sm:$0xf]
  %v1870 = vld [vmem:[%s5 + $0x84] sm:$0xf]
  %v1871 = vld [vmem:[%s5 + $0x88] sm:$0xf]
  %v1872 = vld [vmem:[%s5 + $0x8c] sm:$0xf]
  %v1873 = vld [vmem:[%s5 + $0x90] sm:$0xf]
  %v1874 = vld [vmem:[%s5 + $0x94] sm:$0xf]
  %v1875 = vld [vmem:[%s5 + $0x98] sm:$0xf]
  %v1876 = vld [vmem:[%s5 + $0x9c] sm:$0xf]
  %v1877 = vld [vmem:[%s5 + $0xa0] sm:$0xf]
  %v1878 = vld [vmem:[%s5 + $0xa4] sm:$0xf]
  %v1879 = vld [vmem:[%s5 + $0xa8] sm:$0xf]
  %v1880 = vld [vmem:[%s5 + $0xac] sm:$0xf]
  %v1881 = vld [vmem:[%s5 + $0xb0] sm:$0xf]
  %v1882 = vld [vmem:[%s5 + $0xb4] sm:$0xf]
  %v1883 = vld [vmem:[%s5 + $0xb8] sm:$0xf]
  %v1884 = vld [vmem:[%s5 + $0xbc] sm:$0xf]
  %v1885 = vld [vmem:[%s5 + $0xc0] sm:$0xf]
  %v1886 = vld [vmem:[%s5 + $0xc4] sm:$0xf]
  %v1887 = vld [vmem:[%s5 + $0xc8] sm:$0xf]
  %v1888 = vld [vmem:[%s5 + $0xcc] sm:$0xf]
  %v1889 = vld [vmem:[%s5 + $0xd0] sm:$0xf]
  %v1890 = vld [vmem:[%s5 + $0xd4] sm:$0xf]
  %v1891 = vld [vmem:[%s5 + $0xd8] sm:$0xf]
  %v1892 = vld [vmem:[%s5 + $0xdc] sm:$0xf]
  %v1893 = vld [vmem:[%s5 + $0xe0] sm:$0xf]
  %v1894 = vld [vmem:[%s5 + $0xe4] sm:$0xf]
  %v1895 = vld [vmem:[%s5 + $0xe8] sm:$0xf]
  %v1896 = vld [vmem:[%s5 + $0xec] sm:$0xf]
  %v1897 = vld [vmem:[%s5 + $0xf0] sm:$0xf]
  %v1898 = vld [vmem:[%s5 + $0xf4] sm:$0xf]
  %v1899 = vld [vmem:[%s5 + $0xf8] sm:$0xf]
  %v1900 = vld [vmem:[%s5 + $0xfc] sm:$0xf]
  %v1901 = vld [vmem:[%s5 + $0x100] sm:$0xf]
  %v1902 = vld [vmem:[%s5 + $0x104] sm:$0xf]
  %v1903 = vld [vmem:[%s5 + $0x108] sm:$0xf]
  %v1904 = vld [vmem:[%s5 + $0x10c] sm:$0xf]
  %v1905 = vld [vmem:[%s5 + $0x110] sm:$0xf]
  %v1906 = vld [vmem:[%s5 + $0x114] sm:$0xf]
  %v1907 = vld [vmem:[%s5 + $0x118] sm:$0xf]
  %v1908 = vld [vmem:[%s5 + $0x11c] sm:$0xf]
  %v1909 = vld [vmem:[%s6] sm:$0x1]
  %v1911 = vlaneseq
  %v1912 = vshrl.u32 %v1911, 7
  %v1913 = vsub.s32 0, %v1912
  %v1914 = vrot.slane %v1909, %v1913
  %v1988 = vunpack.c.l.b16 %v1837
  %v1989 = vunpack.c.l.b16 %v1838
  %v1990 = vunpack.c.l.b16 %v1839
  %v1991 = vunpack.c.l.b16 %v1840
  %v1992 = vunpack.c.l.b16 %v1841
  %v1993 = vunpack.c.l.b16 %v1842
  %v1994 = vunpack.c.l.b16 %v1843
  %v1995 = vunpack.c.l.b16 %v1844
  %v1996 = vunpack.c.l.b16 %v1845
  %v1997 = vunpack.c.l.b16 %v1846
  %v1998 = vunpack.c.l.b16 %v1847
  %v1999 = vunpack.c.l.b16 %v1848
  %v2000 = vunpack.c.l.b16 %v1849
  %v2001 = vunpack.c.l.b16 %v1850
  %v2002 = vunpack.c.l.b16 %v1851
  %v2003 = vunpack.c.l.b16 %v1852
  %v2004 = vunpack.c.l.b16 %v1853
  %v2005 = vunpack.c.l.b16 %v1854
  %v2006 = vunpack.c.l.b16 %v1855
  %v2007 = vunpack.c.l.b16 %v1856
  %v2008 = vunpack.c.l.b16 %v1857
  %v2009 = vunpack.c.l.b16 %v1858
  %v2010 = vunpack.c.l.b16 %v1859
  %v2011 = vunpack.c.l.b16 %v1860
  %v2012 = vunpack.c.l.b16 %v1861
  %v2013 = vunpack.c.l.b16 %v1862
  %v2014 = vunpack.c.l.b16 %v1863
  %v2015 = vunpack.c.l.b16 %v1864
  %v2016 = vunpack.c.l.b16 %v1865
  %v2017 = vunpack.c.l.b16 %v1866
  %v2018 = vunpack.c.l.b16 %v1867
  %v2019 = vunpack.c.l.b16 %v1868
  %v2020 = vunpack.c.l.b16 %v1869
  %v2021 = vunpack.c.l.b16 %v1870
  %v2022 = vunpack.c.l.b16 %v1871
  %v2023 = vunpack.c.l.b16 %v1872
  %v2024 = vunpack.c.l.b16 %v1873
  %v2025 = vunpack.c.l.b16 %v1874
  %v2026 = vunpack.c.l.b16 %v1875
  %v2027 = vunpack.c.l.b16 %v1876
  %v2028 = vunpack.c.l.b16 %v1877
  %v2029 = vunpack.c.l.b16 %v1878
  %v2030 = vunpack.c.l.b16 %v1879
  %v2031 = vunpack.c.l.b16 %v1880
  %v2032 = vunpack.c.l.b16 %v1881
  %v2033 = vunpack.c.l.b16 %v1882
  %v2034 = vunpack.c.l.b16 %v1883
  %v2035 = vunpack.c.l.b16 %v1884
  %v2036 = vunpack.c.l.b16 %v1885
  %v2037 = vunpack.c.l.b16 %v1886
  %v2038 = vunpack.c.l.b16 %v1887
  %v2039 = vunpack.c.l.b16 %v1888
  %v2040 = vunpack.c.l.b16 %v1889
  %v2041 = vunpack.c.l.b16 %v1890
  %v2042 = vunpack.c.l.b16 %v1891
  %v2043 = vunpack.c.l.b16 %v1892
  %v2044 = vunpack.c.l.b16 %v1893
  %v2045 = vunpack.c.l.b16 %v1894
  %v2046 = vunpack.c.l.b16 %v1895
  %v2047 = vunpack.c.l.b16 %v1896
  %v2048 = vunpack.c.l.b16 %v1897
  %v2049 = vunpack.c.l.b16 %v1898
  %v2050 = vunpack.c.l.b16 %v1899
  %v2051 = vunpack.c.l.b16 %v1900
  %v2052 = vunpack.c.l.b16 %v1901
  %v2053 = vunpack.c.l.b16 %v1902
  %v2054 = vunpack.c.l.b16 %v1903
  %v2055 = vunpack.c.l.b16 %v1904
  %v2056 = vunpack.c.l.b16 %v1905
  %v2057 = vunpack.c.l.b16 %v1906
  %v2058 = vunpack.c.l.b16 %v1907
  %v2059 = vunpack.c.l.b16 %v1908
  %v2060 = vpack.c.b16 %v1989, %v1988
  %v2061 = vpack.c.b16 %v1991, %v1990
  %v2062 = vpack.c.b16 %v1993, %v1992
  %v2063 = vpack.c.b16 %v1995, %v1994
  %v2064 = vpack.c.b16 %v1997, %v1996
  %v2065 = vpack.c.b16 %v1999, %v1998
  %v2066 = vpack.c.b16 %v2001, %v2000
  %v2067 = vpack.c.b16 %v2003, %v2002
  %v2068 = vpack.c.b16 %v2005, %v2004
  %v2069 = vpack.c.b16 %v2007, %v2006
  %v2070 = vpack.c.b16 %v2009, %v2008
  %v2071 = vpack.c.b16 %v2011, %v2010
  %v2072 = vpack.c.b16 %v2013, %v2012
  %v2073 = vpack.c.b16 %v2015, %v2014
  %v2074 = vpack.c.b16 %v2017, %v2016
  %v2075 = vpack.c.b16 %v2019, %v2018
  %v2076 = vpack.c.b16 %v2021, %v2020
  %v2077 = vpack.c.b16 %v2023, %v2022
  %v2078 = vpack.c.b16 %v2025, %v2024
  %v2079 = vpack.c.b16 %v2027, %v2026
  %v2080 = vpack.c.b16 %v2029, %v2028
  %v2081 = vpack.c.b16 %v2031, %v2030
  %v2082 = vpack.c.b16 %v2033, %v2032
  %v2083 = vpack.c.b16 %v2035, %v2034
  %v2084 = vpack.c.b16 %v2037, %v2036
  %v2085 = vpack.c.b16 %v2039, %v2038
  %v2086 = vpack.c.b16 %v2041, %v2040
  %v2087 = vpack.c.b16 %v2043, %v2042
  %v2088 = vpack.c.b16 %v2045, %v2044
  %v2089 = vpack.c.b16 %v2047, %v2046
  %v2090 = vpack.c.b16 %v2049, %v2048
  %v2091 = vpack.c.b16 %v2051, %v2050
  %v2092 = vpack.c.b16 %v2053, %v2052
  %v2093 = vpack.c.b16 %v2055, %v2054
  %v2094 = vpack.c.b16 %v2057, %v2056
  %v2095 = vpack.c.b16 %v2059, %v2058
  %v2133 = vsel %vm1139, %v1808, 0
  %2135 = vmatprep.subr.bf16.mxu0 0
  %2136 = vmatpush1.bf16.msra.mxu0 %v2060
  %2137 = vmatprep.subr.bf16.mxu0 0
  %2138 = vmatpush1.bf16.msra.mxu0 %v2061
  %2139 = vmatprep.subr.bf16.mxu0 0
  %2140 = vmatpush1.bf16.msra.mxu0 %v2062
  %2141 = vmatprep.subr.bf16.mxu0 0
  %2142 = vmatpush1.bf16.msra.mxu0 %v2063
  %2143 = vmatprep.subr.bf16.mxu0 0
  %2144 = vmatpush1.bf16.msra.mxu0 %v2064
  %2145 = vmatprep.subr.bf16.mxu0 0
  %2146 = vmatpush1.bf16.msra.mxu0 %v2065
  %2147 = vmatprep.subr.bf16.mxu0 0
  %2148 = vmatpush1.bf16.msra.mxu0 %v2066
  %2149 = vmatprep.subr.bf16.mxu0 0
  %2150 = vmatpush1.bf16.msra.mxu0 %v2067
  %2151 = vmatprep.subr.bf16.mxu0 0
  %2152 = vmatpush1.bf16.msra.mxu0 %v2068
  %2153 = vmatprep.subr.bf16.mxu0 0
  %2154 = vmatpush1.bf16.msra.mxu0 %v2069
  %2155 = vmatprep.subr.bf16.mxu0 0
  %2156 = vmatpush1.bf16.msra.mxu0 %v2070
  %2157 = vmatprep.subr.bf16.mxu0 0
  %2158 = vmatpush1.bf16.msra.mxu0 %v2071
  %2159 = vmatprep.subr.bf16.mxu0 0
  %2160 = vmatpush1.bf16.msra.mxu0 %v2072
  %2161 = vmatprep.subr.bf16.mxu0 0
  %2162 = vmatpush1.bf16.msra.mxu0 %v2073
  %2163 = vmatprep.subr.bf16.mxu0 0
  %2164 = vmatpush1.bf16.msra.mxu0 %v2074
  %2165 = vmatprep.subr.bf16.mxu0 0
  %2166 = vmatpush1.bf16.msra.mxu0 %v2075
  %2167 = vmatprep.mubr.bf16.mxu0 %v1827
  %2168 = vmatmul.mubr.bf16.gmra.mrb[0].mxu0 %v1823
  %v2169 = vpop.f32.mrb[0].mxu0
  %v2170 = vadd.f32 %v1914, %v2169
  %v2171 = vpop.f32.mrb[0].mxu0
  %v2172 = vpop.f32.mrb[0].mxu0
  %v2173 = vadd.f32 %v1914, %v2172
  %v2174 = vpop.f32.mrb[0].mxu0
  %2175 = vdwg.mxu0
  %2176 = vmatprep.subr.bf16.mxu0 0
  %2177 = vmatpush1.bf16.msra.mxu0 %v2076
  %2178 = vmatprep.subr.bf16.mxu0 0
  %2179 = vmatpush1.bf16.msra.mxu0 %v2077
  %2180 = vmatprep.subr.bf16.mxu0 0
  %2181 = vmatpush1.bf16.msra.mxu0 %v2078
  %2182 = vmatprep.subr.bf16.mxu0 0
  %2183 = vmatpush1.bf16.msra.mxu0 %v2079
  %2184 = vmatprep.subr.bf16.mxu0 0
  %2185 = vmatpush1.bf16.msra.mxu0 %v2080
  %2186 = vmatprep.subr.bf16.mxu0 0
  %2187 = vmatpush1.bf16.msra.mxu0 %v2081
  %2188 = vmatprep.subr.bf16.mxu0 0
  %2189 = vmatpush1.bf16.msra.mxu0 %v2082
  %2190 = vmatprep.subr.bf16.mxu0 0
  %2191 = vmatpush1.bf16.msra.mxu0 %v2083
  %2192 = vmatprep.subr.bf16.mxu0 0
  %2193 = vmatpush1.bf16.msra.mxu0 %v2084
  %2194 = vmatprep.subr.bf16.mxu0 0
  %2195 = vmatpush1.bf16.msra.mxu0 %v2085
  %2196 = vmatprep.subr.bf16.mxu0 0
  %2197 = vmatpush1.bf16.msra.mxu0 %v2086
  %2198 = vmatprep.subr.bf16.mxu0 0
  %2199 = vmatpush1.bf16.msra.mxu0 %v2087
  %2200 = vmatprep.subr.bf16.mxu0 0
  %2201 = vmatpush1.bf16.msra.mxu0 %v2088
  %2202 = vmatprep.subr.bf16.mxu0 0
  %2203 = vmatpush1.bf16.msra.mxu0 %v2089
  %2204 = vmatprep.subr.bf16.mxu0 0
  %2205 = vmatpush1.bf16.msra.mxu0 %v2090
  %2206 = vmatprep.subr.bf16.mxu0 0
  %2207 = vmatpush1.bf16.msra.mxu0 %v2091
  %2208 = vmatprep.mubr.bf16.mxu0 %v1835
  %2209 = vmatmul.mubr.bf16.gmra.mrb[0].mxu0 %v1831
  %v2210 = vpop.f32.mrb[0].mxu0
  %v2211 = vadd.f32 %v2170, %v2210
  %v2212 = vpop.f32.mrb[0].mxu0
  %v2213 = vpop.f32.mrb[0].mxu0
  %v2214 = vadd.f32 %v2173, %v2213
  %v2215 = vpop.f32.mrb[0].mxu0
  %2216 = vdwg.mxu0
  %2217 = vmatprep.subr.bf16.mxu0 0
  %2218 = vmatpush1.bf16.msra.mxu0 %v2092
  %2219 = vmatprep.subr.bf16.mxu0 0
  %2220 = vmatpush1.bf16.msra.mxu0 %v2093
  %2221 = vmatprep.subr.bf16.mxu0 0
  %2222 = vmatpush1.bf16.msra.mxu0 %v2094
  %2223 = vmatprep.subr.bf16.mxu0 0
  %2224 = vmatpush1.bf16.msra.mxu0 %v2095
  %2225 = vmatprep.subr.bf16.mxu0 0
  %2226 = vmatpush1.bf16.msra.mxu0 0
  %2227 = vmatprep.subr.bf16.mxu0 0
  %2228 = vmatpush1.bf16.msra.mxu0 0
  %2229 = vmatprep.subr.bf16.mxu0 0
  %2230 = vmatpush1.bf16.msra.mxu0 0
  %2231 = vmatprep.subr.bf16.mxu0 0
  %2232 = vmatpush1.bf16.msra.mxu0 0
  %2233 = vmatprep.subr.bf16.mxu0 0
  %2234 = vmatpush1.bf16.msra.mxu0 0
  %2235 = vmatprep.subr.bf16.mxu0 0
  %2236 = vmatpush1.bf16.msra.mxu0 0
  %2237 = vmatprep.subr.bf16.mxu0 0
  %2238 = vmatpush1.bf16.msra.mxu0 0
  %2239 = vmatprep.subr.bf16.mxu0 0
  %2240 = vmatpush1.bf16.msra.mxu0 0
  %2241 = vmatprep.subr.bf16.mxu0 0
  %2242 = vmatpush1.bf16.msra.mxu0 0
  %2243 = vmatprep.subr.bf16.mxu0 0
  %2244 = vmatpush1.bf16.msra.mxu0 0
  %2245 = vmatprep.subr.bf16.mxu0 0
  %2246 = vmatpush1.bf16.msra.mxu0 0
  %2247 = vmatprep.subr.bf16.mxu0 0
  %2248 = vmatpush1.bf16.msra.mxu0 0
  %2249 = vmatprep.mubr.bf16.mxu0 0
  %2250 = vmatmul.mubr.bf16.gmra.mrb[0].mxu0 %v2133
  %v2251 = vpop.f32.mrb[0].mxu0
  %v2252 = vadd.f32 %v2211, %v2251
  %v2253 = vpop.f32.mrb[0].mxu0
  %v2254 = vpop.f32.mrb[0].mxu0
  %v2255 = vadd.f32 %v2214, %v2254
  %v2256 = vpop.f32.mrb[0].mxu0
  %2257 = vdwg.mxu0
  %v2258 = vmax.f32 %v2252, 0.0
  %v2259 = vmax.f32 %v2255, 0.0
  %v2260 = vpack.c.bf16 %v2259, %v2258
  %v2261 = vld [vmem:[%s7] sm:$0xf]
  %v2262 = vld [vmem:[%s7 + $0x4] sm:$0xf]
  %v2263 = vld [vmem:[%s7 + $0x8] sm:$0xf]
  %v2264 = vld [vmem:[%s7 + $0xc] sm:$0xf]
  %v2265 = vld [vmem:[%s7 + $0x10] sm:$0xf]
  %v2266 = vld [vmem:[%s7 + $0x14] sm:$0xf]
  %v2267 = vld [vmem:[%s7 + $0x18] sm:$0xf]
  %v2268 = vld [vmem:[%s7 + $0x1c] sm:$0xf]
  %v2269 = vld [vmem:[%s7 + $0x20] sm:$0xf]
  %v2270 = vld [vmem:[%s7 + $0x24] sm:$0xf]
  %v2271 = vld [vmem:[%s7 + $0x28] sm:$0xf]
  %v2272 = vld [vmem:[%s7 + $0x2c] sm:$0xf]
  %v2273 = vld [vmem:[%s7 + $0x30] sm:$0xf]
  %v2274 = vld [vmem:[%s7 + $0x34] sm:$0xf]
  %v2275 = vld [vmem:[%s7 + $0x38] sm:$0xf]
  %v2276 = vld [vmem:[%s7 + $0x3c] sm:$0xf]
  %v2277 = vld [vmem:[%s8] sm:$0x1]
  %v2279 = vlaneseq
  %v2280 = vshrl.u32 %v2279, 7
  %v2281 = vsub.s32 0, %v2280
  %v2282 = vrot.slane %v2277, %v2281
  %v2300 = vunpack.c.l.b16 %v2261
  %v2301 = vunpack.c.l.b16 %v2262
  %v2302 = vunpack.c.l.b16 %v2263
  %v2303 = vunpack.c.l.b16 %v2264
  %v2304 = vunpack.c.l.b16 %v2265
  %v2305 = vunpack.c.l.b16 %v2266
  %v2306 = vunpack.c.l.b16 %v2267
  %v2307 = vunpack.c.l.b16 %v2268
  %v2308 = vunpack.c.l.b16 %v2269
  %v2309 = vunpack.c.l.b16 %v2270
  %v2310 = vunpack.c.l.b16 %v2271
  %v2311 = vunpack.c.l.b16 %v2272
  %v2312 = vunpack.c.l.b16 %v2273
  %v2313 = vunpack.c.l.b16 %v2274
  %v2314 = vunpack.c.l.b16 %v2275
  %v2315 = vunpack.c.l.b16 %v2276
  %v2316 = vpack.c.b16 %v2301, %v2300
  %v2317 = vpack.c.b16 %v2303, %v2302
  %v2318 = vpack.c.b16 %v2305, %v2304
  %v2319 = vpack.c.b16 %v2307, %v2306
  %v2320 = vpack.c.b16 %v2309, %v2308
  %v2321 = vpack.c.b16 %v2311, %v2310
  %v2322 = vpack.c.b16 %v2313, %v2312
  %v2323 = vpack.c.b16 %v2315, %v2314
  %2332 = vmatprep.subr.bf16.mxu0 0
  %2333 = vmatpush1.bf16.msra.mxu0 %v2316
  %2334 = vmatprep.subr.bf16.mxu0 0
  %2335 = vmatpush1.bf16.msra.mxu0 %v2317
  %2336 = vmatprep.subr.bf16.mxu0 0
  %2337 = vmatpush1.bf16.msra.mxu0 %v2318
  %2338 = vmatprep.subr.bf16.mxu0 0
  %2339 = vmatpush1.bf16.msra.mxu0 %v2319
  %2340 = vmatprep.subr.bf16.mxu0 0
  %2341 = vmatpush1.bf16.msra.mxu0 %v2320
  %2342 = vmatprep.subr.bf16.mxu0 0
  %2343 = vmatpush1.bf16.msra.mxu0 %v2321
  %2344 = vmatprep.subr.bf16.mxu0 0
  %2345 = vmatpush1.bf16.msra.mxu0 %v2322
  %2346 = vmatprep.subr.bf16.mxu0 0
  %2347 = vmatpush1.bf16.msra.mxu0 %v2323
  %2348 = vmatprep.subr.bf16.mxu0 0
  %2349 = vmatpush1.bf16.msra.mxu0 0
  %2350 = vmatprep.subr.bf16.mxu0 0
  %2351 = vmatpush1.bf16.msra.mxu0 0
  %2352 = vmatprep.subr.bf16.mxu0 0
  %2353 = vmatpush1.bf16.msra.mxu0 0
  %2354 = vmatprep.subr.bf16.mxu0 0
  %2355 = vmatpush1.bf16.msra.mxu0 0
  %2356 = vmatprep.subr.bf16.mxu0 0
  %2357 = vmatpush1.bf16.msra.mxu0 0
  %2358 = vmatprep.subr.bf16.mxu0 0
  %2359 = vmatpush1.bf16.msra.mxu0 0
  %2360 = vmatprep.subr.bf16.mxu0 0
  %2361 = vmatpush1.bf16.msra.mxu0 0
  %2362 = vmatprep.subr.bf16.mxu0 0
  %2363 = vmatpush1.bf16.msra.mxu0 0
  %2364 = vmatprep.mubr.bf16.mxu0 0
  %2365 = vmatmul.mubr.bf16.gmra.mrb[0].mxu0 %v2260
  %v2366 = vpop.f32.mrb[0].mxu0
  %v2367 = vadd.f32 %v2282, %v2366
  %v2368 = vpop.f32.mrb[0].mxu0
  %v2369 = vpop.f32.mrb[0].mxu0
  %v2370 = vadd.f32 %v2282, %v2369
  %v2371 = vpop.f32.mrb[0].mxu0
  %2372 = vdwg.mxu0
  %v2373 = vtanh.pop %v2367
  %v2374 = vtanh.pop %v2370
  %v2375 = vpack.c.bf16 %v2374, %v2373
  %v2376 = vld [vmem:[%s9] sm:$0xf]
  %v2377 = vld [vmem:[%s9 + $0x4] sm:$0xf]
  %v2378 = vld [vmem:[%s9 + $0x8] sm:$0xf]
  %v2379 = vld [vmem:[%s9 + $0xc] sm:$0xf]
  %v2380 = vld [vmem:[%s9 + $0x10] sm:$0xf]
  %v2381 = vld [vmem:[%s9 + $0x14] sm:$0xf]
  %v2382 = vld [vmem:[%s9 + $0x18] sm:$0xf]
  %v2383 = vld [vmem:[%s9 + $0x1c] sm:$0xf]
  %v2384 = vld [vmem:[%s10] sm:$0x1]
  %v2386 = vlaneseq
  %v2387 = vshrl.u32 %v2386, 7
  %v2388 = vsub.s32 0, %v2387
  %v2389 = vrot.slane %v2384, %v2388
  %v2399 = vunpack.c.l.b16 %v2376
  %v2400 = vunpack.c.l.b16 %v2377
  %v2401 = vunpack.c.l.b16 %v2378
  %v2402 = vunpack.c.l.b16 %v2379
  %v2403 = vunpack.c.l.b16 %v2380
  %v2404 = vunpack.c.l.b16 %v2381
  %v2405 = vunpack.c.l.b16 %v2382
  %v2406 = vunpack.c.l.b16 %v2383
  %v2407 = vpack.c.b16 %v2400, %v2399
  %v2408 = vpack.c.b16 %v2402, %v2401
  %v2409 = vpack.c.b16 %v2404, %v2403
  %v2410 = vpack.c.b16 %v2406, %v2405
  %v2416 = vsel %vm1139, %v2375, 0
  %2418 = vmatprep.subr.bf16.mxu0 0
  %2419 = vmatpush1.bf16.msra.mxu0 %v2407
  %2420 = vmatprep.subr.bf16.mxu0 0
  %2421 = vmatpush1.bf16.msra.mxu0 %v2408
  %2422 = vmatprep.subr.bf16.mxu0 0
  %2423 = vmatpush1.bf16.msra.mxu0 %v2409
  %2424 = vmatprep.subr.bf16.mxu0 0
  %2425 = vmatpush1.bf16.msra.mxu0 %v2410
  %2426 = vmatprep.subr.bf16.mxu0 0
  %2427 = vmatpush1.bf16.msra.mxu0 0
  %2428 = vmatprep.subr.bf16.mxu0 0
  %2429 = vmatpush1.bf16.msra.mxu0 0
  %2430 = vmatprep.subr.bf16.mxu0 0
  %2431 = vmatpush1.bf16.msra.mxu0 0
  %2432 = vmatprep.subr.bf16.mxu0 0
  %2433 = vmatpush1.bf16.msra.mxu0 0
  %2434 = vmatprep.subr.bf16.mxu0 0
  %2435 = vmatpush1.bf16.msra.mxu0 0
  %2436 = vmatprep.subr.bf16.mxu0 0
  %2437 = vmatpush1.bf16.msra.mxu0 0
  %2438 = vmatprep.subr.bf16.mxu0 0
  %2439 = vmatpush1.bf16.msra.mxu0 0
  %2440 = vmatprep.subr.bf16.mxu0 0
  %2441 = vmatpush1.bf16.msra.mxu0 0
  %2442 = vmatprep.subr.bf16.mxu0 0
  %2443 = vmatpush1.bf16.msra.mxu0 0
  %2444 = vmatprep.subr.bf16.mxu0 0
  %2445 = vmatpush1.bf16.msra.mxu0 0
  %2446 = vmatprep.subr.bf16.mxu0 0
  %2447 = vmatpush1.bf16.msra.mxu0 0
  %2448 = vmatprep.subr.bf16.mxu0 0
  %2449 = vmatpush1.bf16.msra.mxu0 0
  %2450 = vmatprep.mubr.bf16.mxu0 0
  %2451 = vmatmul.mubr.bf16.gmra.mrb[0].mxu0 %v2416
  %v2452 = vpop.f32.mrb[0].mxu0
  %v2453 = vadd.f32 %v2389, %v2452
  %v2454 = vpop.f32.mrb[0].mxu0
  %v2455 = vpop.f32.mrb[0].mxu0
  %v2456 = vadd.f32 %v2389, %v2455
  %v2457 = vpop.f32.mrb[0].mxu0
  %2458 = vdwg.mxu0
  %2459 = vst [vmem:[%s11] sm:$0xff] %v2453
  %2460 = vst [vmem:[%s11 + $0x8] sm:$0xff] %v2456
  // Predicated region
  $region46: #{cnn_forward.1} parent=0 // pred_check
    _
  $region47: #{cnn_forward.1} parent=0 // pred_check_branch
    %2462 = sbr.rel (0) target = $region49
  $region48: #{cnn_forward.1} parent=0 // pred_region
    _
  $region49: #{cnn_forward.1} parent=0 // pred_fallthru
    _
  // Predicated region
  $region50: #{cnn_forward.1} parent=0 // pred_check
    _
  $region51: #{cnn_forward.1} parent=0 // pred_check_branch
    %2464 = sbr.rel (0) target = $region53
  $region52: #{cnn_forward.1} parent=0 // pred_region
    _
  $region53: #{cnn_forward.1} parent=0 // pred_fallthru
    _

</llo_original>
